<compile_context>
chip_gen: v7x
topology: tpu7x:2x2x1
jax: 0.10.0
libtpu: 0.0.40
codegen_flags: <defaults>
</compile_context>

<pallas_src>
import functools

import jax
import jax.numpy as jnp
from jax.experimental import pallas as pl
from jax.experimental.pallas import tpu as pltpu


def _t5_cross_attn_kernel(hid_ref, kv_ref, lnw_ref, wq_ref, wkv_ref, wo_ref,
                          out_ref, q_sc, m_sc, l_sc, acc_sc,
                          *, eps, n_heads, d_kv):
    """Grid = (batch, q-tiles, kv-tiles); one step = one (tq x tk) attention tile.

    hid_ref : (1, tq, D)        hidden states (residual stream); resident across kv axis
    kv_ref  : (1, tk, D)  bf16  encoder states block for this kv step
    lnw_ref : (1, D)      f32   T5LayerNorm weight
    wq_ref  : (D, inner)  bf16  query projection              (inner = H * dk)
    wkv_ref : (D, 2*inner)bf16  fused key|value projection    (K lanes first, V lanes second)
    wo_ref  : (inner, D)  bf16  output projection
    out_ref : (1, tq, D)        written on the last kv step only
    q_sc    : (tq, inner) bf16  scratch: projected queries (computed at kv step 0)
    m_sc    : (tq, H)     f32   scratch: per-head running max
    l_sc    : (tq, H)     f32   scratch: per-head running softmax denominator
    acc_sc  : (tq, inner) f32   scratch: per-head running (unnormalized) context
    """
    f32, bf16 = jnp.float32, jnp.bfloat16
    H, dk = n_heads, d_kv
    inner = H * dk
    ki = pl.program_id(2)

    @pl.when(ki == 0)
    def _init():
        # --- T5LayerNorm (RMS, f32) + Q projection, once per (batch, q-tile).
        hid = hid_ref[0].astype(f32)                               # (tq, D)
        var = jnp.mean(hid * hid, axis=-1, keepdims=True)
        normed = hid * jax.lax.rsqrt(var + eps) * lnw_ref[...]     # (tq, D) f32
        # single lane-dense matmul: (tq, D) @ (D, inner), f32 accumulate on the MXU
        q_sc[...] = jnp.dot(normed.astype(bf16), wq_ref[...],
                            preferred_element_type=f32).astype(bf16)
        m_sc[...] = jnp.full_like(m_sc, -jnp.inf)
        l_sc[...] = jnp.zeros_like(l_sc)
        acc_sc[...] = jnp.zeros_like(acc_sc)

    # --- fused K|V projection for this kv block: one lane-dense matmul
    # (tk, D) bf16 @ (D, 2*inner) bf16 -> (tk, 2*inner) f32
    kvp = jnp.dot(kv_ref[0], wkv_ref[...], preferred_element_type=f32)

    # --- per-head attention with online softmax.  H is a small model constant; the
    # (tq, tk) score tile is lane-dense, and the dk-deep contractions are algorithmic.
    q2d = q_sc[...]                                                # (tq, inner) bf16
    for h in range(H):
        hs = slice(h * dk, (h + 1) * dk)
        kh = kvp[:, hs].astype(bf16)                               # (tk, dk)
        vh = kvp[:, inner + h * dk: inner + (h + 1) * dk].astype(bf16)
        # scores_h = q_h @ k_h^T   (T5: no 1/sqrt(dk) scaling; position_bias == 0)
        s = jax.lax.dot_general(q2d[:, hs], kh, (((1,), (1,)), ((), ())),
                                preferred_element_type=f32)        # (tq, tk)
        m_prev = m_sc[:, h:h + 1]
        m_new = jnp.maximum(m_prev, jnp.max(s, axis=-1, keepdims=True))
        alpha = jnp.exp(m_prev - m_new)
        p = jnp.exp(s - m_new)                                     # (tq, tk) f32 (EUP)
        l_sc[:, h:h + 1] = alpha * l_sc[:, h:h + 1] + jnp.sum(p, axis=-1, keepdims=True)
        ctx_h = jnp.dot(p.astype(bf16), vh, preferred_element_type=f32)   # (tq, dk)
        acc_sc[:, hs] = alpha * acc_sc[:, hs] + ctx_h
        m_sc[:, h:h + 1] = m_new

    @pl.when(ki == pl.num_programs(2) - 1)
    def _finalize():
        # per-head softmax normalization (exact divide: torch parity, negligible cost)
        for h in range(H):
            hs = slice(h * dk, (h + 1) * dk)
            acc_sc[:, hs] = acc_sc[:, hs] * (1.0 / l_sc[:, h:h + 1])
        # single lane-dense output projection:
        #   (tq, inner) @ (inner, D)  ==  sum_h ctx_h @ Wo_h  (accumulated on the MXU)
        attn_out = jnp.dot(acc_sc[...].astype(bf16), wo_ref[...],
                           preferred_element_type=f32)             # (tq, D)
        # residual add explicitly in f32 (dropout = identity in eval mode)
        out_ref[0] = (hid_ref[0].astype(f32) + attn_out).astype(out_ref.dtype)


def t5_layer_cross_attention(hidden_states, key_value_states, ln_weight,
                             wq, wk, wv, wo, *, n_heads, d_kv, eps=1e-6,
                             q_tile=256, kv_tile=512,
                             materialize_position_bias=False):
    """hidden_states: (B, Lq, D); key_value_states: (B, Lk, D);
    wq/wk/wv: (D, n_heads*d_kv) (x @ W convention); wo: (n_heads*d_kv, D)."""
    B, Lq, D = hidden_states.shape
    _, Lk, _ = key_value_states.shape
    inner = n_heads * d_kv
    assert wq.shape == (D, inner) and wk.shape == (D, inner)
    assert wv.shape == (D, inner) and wo.shape == (inner, D)

    tq = min(q_tile, Lq)
    tk = min(kv_tile, Lk)
    assert Lq % tq == 0 and Lk % tk == 0, "Lq/Lk must be divisible by the tile sizes"
    assert tq % 8 == 0 or tq == Lq
    assert tk % 8 == 0 or tk == Lk
    nq, nk = Lq // tq, Lk // tk

    bf16 = jnp.bfloat16
    # Weights in their original (x @ W) layouts; K|V fused along lanes, bf16 for MXU.
    wq_b = wq.astype(bf16)                                        # (D, inner)
    wkv_b = jnp.concatenate([wk, wv], axis=-1).astype(bf16)       # (D, 2*inner)
    wo_b = wo.astype(bf16)                                        # (inner, D)
    lnw = ln_weight.reshape(1, D).astype(jnp.float32)
    # Encoder states only ever feed bf16 MXU operands -> DMA them as bf16.
    kv_b = key_value_states.astype(bf16)

    kernel = functools.partial(_t5_cross_attn_kernel, eps=eps,
                               n_heads=n_heads, d_kv=d_kv)

    layer_output = pl.pallas_call(
        kernel,
        out_shape=jax.ShapeDtypeStruct((B, Lq, D), hidden_states.dtype),
        grid_spec=pltpu.PrefetchScalarGridSpec(
            num_scalar_prefetch=0,
            grid=(B, nq, nk),
            in_specs=[
                pl.BlockSpec((1, tq, D), lambda b, qi, ki: (b, qi, 0)),        # hidden
                pl.BlockSpec((1, tk, D), lambda b, qi, ki: (b, ki, 0)),        # kv (bf16)
                pl.BlockSpec((1, D), lambda b, qi, ki: (0, 0)),                # LN weight
                pl.BlockSpec((D, inner), lambda b, qi, ki: (0, 0)),            # Wq
                pl.BlockSpec((D, 2 * inner), lambda b, qi, ki: (0, 0)),        # Wk|Wv
                pl.BlockSpec((inner, D), lambda b, qi, ki: (0, 0)),            # Wo
            ],
            out_specs=pl.BlockSpec((1, tq, D), lambda b, qi, ki: (b, qi, 0)),
            scratch_shapes=[
                pltpu.VMEM((tq, inner), bf16),           # projected queries
                pltpu.VMEM((tq, n_heads), jnp.float32),  # running max (per head)
                pltpu.VMEM((tq, n_heads), jnp.float32),  # running denominator
                pltpu.VMEM((tq, inner), jnp.float32),    # running context
            ],
        ),
        compiler_params=pltpu.CompilerParams(
            dimension_semantics=("parallel", "parallel", "arbitrary"),
            vmem_limit_bytes=48 * 1024 * 1024,           # budgeted for v7x's 64 MiB VMEM
        ),
    )(hidden_states, kv_b, lnw, wq_b, wkv_b, wo_b)

    # Do not materialize the (1, H, Lq, Lk) zeros the torch path returns unless the
    # caller actually consumes it.
    position_bias = None
    if materialize_position_bias:
        position_bias = jnp.zeros((1, n_heads, Lq, Lk), dtype=hidden_states.dtype)
    return layer_output, position_bias


def _reference(hidden, kv, ln_weight, wq, wk, wv, wo, n_heads, d_kv, eps=1e-6):
    """Pure-JAX reference mirroring the torch forward and the kernel's bf16 MXU casts
    (f32 norm/softmax/residual, bf16 matmul operands, f32 accumulation)."""
    B, Lq, D = hidden.shape
    Lk = kv.shape[1]
    bf16, f32 = jnp.bfloat16, jnp.float32
    hid32 = hidden.astype(f32)
    var = jnp.mean(hid32 * hid32, axis=-1, keepdims=True)
    normed = hid32 * jax.lax.rsqrt(var + eps) * ln_weight.astype(f32)
    q = jnp.einsum("bld,de->ble", normed.astype(bf16), wq.astype(bf16),
                   preferred_element_type=f32).astype(bf16).reshape(B, Lq, n_heads, d_kv)
    k = jnp.einsum("bld,de->ble", kv.astype(bf16), wk.astype(bf16),
                   preferred_element_type=f32).reshape(B, Lk, n_heads, d_kv)
    v = jnp.einsum("bld,de->ble", kv.astype(bf16), wv.astype(bf16),
                   preferred_element_type=f32).reshape(B, Lk, n_heads, d_kv)
    scores = jnp.einsum("bqhd,bkhd->bhqk", q, k.astype(bf16),
                        preferred_element_type=f32)
    attn = jax.nn.softmax(scores, axis=-1)
    ctx = jnp.einsum("bhqk,bkhd->bqhd", attn.astype(bf16), v.astype(bf16),
                     preferred_element_type=f32).reshape(B, Lq, n_heads * d_kv)
    out = hid32 + jnp.einsum("ble,ed->bld", ctx.astype(bf16), wo.astype(bf16),
                             preferred_element_type=f32)
    return out.astype(hidden.dtype)


if __name__ == "__main__":
    # Small shapes consistent with the module: d_model=32, n_heads=4, d_kv=8.
    # Tiles chosen so the grid is (2, 2, 2): exercises batch / q-tile / kv-tile axes
    # and the online-softmax accumulation across two kv steps.
    B, Lq, Lk, D = 2, 16, 32, 32
    n_heads, d_kv = 4, 8
    inner = n_heads * d_kv

    key = jax.random.PRNGKey(0)
    k_hid, k_kv, k_q, k_k, k_v, k_o, k_ln = jax.random.split(key, 7)

    hidden_states = jax.random.normal(k_hid, (B, Lq, D), dtype=jnp.float32)
    key_value_states = jax.random.normal(k_kv, (B, Lk, D), dtype=jnp.float32)

    scale = 1.0 / jnp.sqrt(jnp.float32(D))
    wq = jax.random.normal(k_q, (D, inner), dtype=jnp.float32) * scale
    wk = jax.random.normal(k_k, (D, inner), dtype=jnp.float32) * scale
    wv = jax.random.normal(k_v, (D, inner), dtype=jnp.float32) * scale
    wo = jax.random.normal(k_o, (inner, D), dtype=jnp.float32) * scale
    ln_weight = 1.0 + 0.01 * jax.random.normal(k_ln, (D,), dtype=jnp.float32)

    out, pos_bias = t5_layer_cross_attention(
        hidden_states, key_value_states, ln_weight, wq, wk, wv, wo,
        n_heads=n_heads, d_kv=d_kv, q_tile=8, kv_tile=16)
    out = jax.block_until_ready(out)

    ref = _reference(hidden_states, key_value_states, ln_weight, wq, wk, wv, wo,
                     n_heads, d_kv)
    assert out.shape == (B, Lq, D)
    max_err = float(jnp.max(jnp.abs(out - ref)))
    # Tolerance absorbs bf16 MXU rounding-order differences (online vs. full softmax).
    assert jnp.allclose(out, ref, atol=2e-2, rtol=2e-2), (
        f"mismatch vs pure-JAX reference, max abs err = {max_err}")
    print("KERNEL_OK")
</pallas_src>

<mosaic_0001>
module attributes {stable_mosaic.version = 11 : i64} {
  func.func @_t5_cross_attn_kernel(%arg0: i32, %arg1: i32, %arg2: i32, %arg3: memref<1x8x32xf32, #tpu.memory_space<vmem>>, %arg4: memref<1x16x32xbf16, #tpu.memory_space<vmem>>, %arg5: memref<1x32xf32, #tpu.memory_space<vmem>>, %arg6: memref<32x32xbf16, #tpu.memory_space<vmem>>, %arg7: memref<32x64xbf16, #tpu.memory_space<vmem>>, %arg8: memref<32x32xbf16, #tpu.memory_space<vmem>>, %arg9: memref<1x8x32xf32, #tpu.memory_space<vmem>>, %arg10: memref<8x32xbf16, #tpu.memory_space<vmem>>, %arg11: memref<8x4xf32, #tpu.memory_space<vmem>>, %arg12: memref<8x4xf32, #tpu.memory_space<vmem>>, %arg13: memref<8x32xf32, #tpu.memory_space<vmem>>) attributes {dimension_semantics = [#tpu.dimension_semantics<parallel>, #tpu.dimension_semantics<parallel>, #tpu.dimension_semantics<arbitrary>], iteration_bounds = array<i64: 2, 2, 2>, scalar_prefetch = 0 : i64, scratch_operands = 4 : i64, tpu.core_type = #tpu.core_type<tc>, window_params = [{transform_indices = @transform_0, window_bounds = array<i64: 1, 8, 32>}, {transform_indices = @transform_1, window_bounds = array<i64: 1, 16, 32>}, {pipeline_mode = #tpu.pipeline_mode<synchronous>, transform_indices = @transform_2, window_bounds = array<i64: 1, 32>}, {pipeline_mode = #tpu.pipeline_mode<synchronous>, transform_indices = @transform_3, window_bounds = array<i64: 32, 32>}, {pipeline_mode = #tpu.pipeline_mode<synchronous>, transform_indices = @transform_4, window_bounds = array<i64: 32, 64>}, {pipeline_mode = #tpu.pipeline_mode<synchronous>, transform_indices = @transform_5, window_bounds = array<i64: 32, 32>}, {transform_indices = @transform_6, window_bounds = array<i64: 1, 8, 32>}]} {
    %c0_i32 = arith.constant 0 : i32
    %0 = arith.cmpi eq, %arg2, %c0_i32 : i32
    %1 = arith.extui %0 : i1 to i32
    %c0_i32_0 = arith.constant 0 : i32
    %2 = arith.cmpi ne, %1, %c0_i32_0 : i32
    scf.if %2 {
      %c0_66 = arith.constant 0 : index
      %c0_67 = arith.constant 0 : index
      %c0_68 = arith.constant 0 : index
      %127 = vector.load %arg3[%c0_66, %c0_67, %c0_68] : memref<1x8x32xf32, #tpu.memory_space<vmem>>, vector<1x8x32xf32>
      %128 = vector.shape_cast %127 : vector<1x8x32xf32> to vector<8x32xf32>
      %129 = arith.mulf %128, %128 : vector<8x32xf32>
      %cst_69 = arith.constant dense<0.000000e+00> : vector<8xf32>
      %130 = vector.multi_reduction <add>, %129, %cst_69 [1] : vector<8x32xf32> to vector<8xf32>
      %131 = vector.shape_cast %130 : vector<8xf32> to vector<8x1xf32>
      %cst_70 = arith.constant 3.200000e+01 : f32
      %132 = vector.broadcast %cst_70 : f32 to vector<8x1xf32>
      %133 = arith.divf %131, %132 : vector<8x1xf32>
      %cst_71 = arith.constant 9.99999997E-7 : f32
      %134 = vector.broadcast %cst_71 : f32 to vector<8x1xf32>
      %135 = arith.addf %133, %134 : vector<8x1xf32>
      %136 = math.rsqrt %135 : vector<8x1xf32>
      %137 = vector.broadcast %136 : vector<8x1xf32> to vector<8x32xf32>
      %138 = arith.mulf %128, %137 : vector<8x32xf32>
      %c0_72 = arith.constant 0 : index
      %c0_73 = arith.constant 0 : index
      %139 = vector.load %arg5[%c0_72, %c0_73] : memref<1x32xf32, #tpu.memory_space<vmem>>, vector<1x32xf32>
      %140 = vector.broadcast %139 : vector<1x32xf32> to vector<8x32xf32>
      %141 = arith.mulf %138, %140 : vector<8x32xf32>
      %142 = arith.truncf %141 : vector<8x32xf32> to vector<8x32xbf16>
      %c0_74 = arith.constant 0 : index
      %c0_75 = arith.constant 0 : index
      %143 = vector.load %arg6[%c0_74, %c0_75] : memref<32x32xbf16, #tpu.memory_space<vmem>>, vector<32x32xbf16>
      %cst_76 = arith.constant dense<0.000000e+00> : vector<8x32xf32>
      %144 = tpu.matmul %142, %143, %cst_76 {dimension_numbers = #tpu.dot_dimension_numbers<[1], [0], [0], [1], [0, 0, 1, 1], [], []>} : vector<8x32xbf16>, vector<32x32xbf16>, vector<8x32xf32> -> vector<8x32xf32>
      %145 = arith.truncf %144 : vector<8x32xf32> to vector<8x32xbf16>
      %c0_77 = arith.constant 0 : index
      %c0_78 = arith.constant 0 : index
      %146 = vector.load %arg10[%c0_77, %c0_78] : memref<8x32xbf16, #tpu.memory_space<vmem>>, vector<8x32xbf16>
      tpu.vector_store %arg10[%c0_77, %c0_78], %145 {strides = array<i32>} : memref<8x32xbf16, #tpu.memory_space<vmem>>, vector<8x32xbf16>,
      %cst_79 = arith.constant 0xFF800000 : f32
      %147 = vector.broadcast %cst_79 : f32 to vector<8x4xf32>
      %c0_80 = arith.constant 0 : index
      %c0_81 = arith.constant 0 : index
      %148 = vector.load %arg11[%c0_80, %c0_81] : memref<8x4xf32, #tpu.memory_space<vmem>>, vector<8x4xf32>
      tpu.vector_store %arg11[%c0_80, %c0_81], %147 {strides = array<i32>} : memref<8x4xf32, #tpu.memory_space<vmem>>, vector<8x4xf32>,
      %cst_82 = arith.constant 0.000000e+00 : f32
      %149 = vector.broadcast %cst_82 : f32 to vector<8x4xf32>
      %c0_83 = arith.constant 0 : index
      %c0_84 = arith.constant 0 : index
      %150 = vector.load %arg12[%c0_83, %c0_84] : memref<8x4xf32, #tpu.memory_space<vmem>>, vector<8x4xf32>
      tpu.vector_store %arg12[%c0_83, %c0_84], %149 {strides = array<i32>} : memref<8x4xf32, #tpu.memory_space<vmem>>, vector<8x4xf32>,
      %cst_85 = arith.constant 0.000000e+00 : f32
      %151 = vector.broadcast %cst_85 : f32 to vector<8x32xf32>
      %c0_86 = arith.constant 0 : index
      %c0_87 = arith.constant 0 : index
      %152 = vector.load %arg13[%c0_86, %c0_87] : memref<8x32xf32, #tpu.memory_space<vmem>>, vector<8x32xf32>
      tpu.vector_store %arg13[%c0_86, %c0_87], %151 {strides = array<i32>} : memref<8x32xf32, #tpu.memory_space<vmem>>, vector<8x32xf32>,
    } else {
    }
    %c0 = arith.constant 0 : index
    %c0_1 = arith.constant 0 : index
    %c0_2 = arith.constant 0 : index
    %3 = vector.load %arg4[%c0, %c0_1, %c0_2] : memref<1x16x32xbf16, #tpu.memory_space<vmem>>, vector<1x16x32xbf16>
    %4 = vector.shape_cast %3 : vector<1x16x32xbf16> to vector<16x32xbf16>
    %c0_3 = arith.constant 0 : index
    %c0_4 = arith.constant 0 : index
    %5 = vector.load %arg7[%c0_3, %c0_4] : memref<32x64xbf16, #tpu.memory_space<vmem>>, vector<32x64xbf16>
    %cst = arith.constant dense<0.000000e+00> : vector<16x64xf32>
    %6 = tpu.matmul %4, %5, %cst {dimension_numbers = #tpu.dot_dimension_numbers<[1], [0], [0], [1], [0, 0, 1, 1], [], []>} : vector<16x32xbf16>, vector<32x64xbf16>, vector<16x64xf32> -> vector<16x64xf32>
    %c0_5 = arith.constant 0 : index
    %c0_6 = arith.constant 0 : index
    %7 = vector.load %arg10[%c0_5, %c0_6] : memref<8x32xbf16, #tpu.memory_space<vmem>>, vector<8x32xbf16>
    %8 = vector.extract_strided_slice %6 {offsets = [0, 0], sizes = [16, 8], strides = [1, 1]} : vector<16x64xf32> to vector<16x8xf32>
    %9 = arith.truncf %8 : vector<16x8xf32> to vector<16x8xbf16>
    %10 = vector.extract_strided_slice %6 {offsets = [0, 32], sizes = [16, 8], strides = [1, 1]} : vector<16x64xf32> to vector<16x8xf32>
    %11 = arith.truncf %10 : vector<16x8xf32> to vector<16x8xbf16>
    %12 = vector.extract_strided_slice %7 {offsets = [0, 0], sizes = [8, 8], strides = [1, 1]} : vector<8x32xbf16> to vector<8x8xbf16>
    %cst_7 = arith.constant dense<0.000000e+00> : vector<8x16xf32>
    %13 = tpu.matmul %12, %9, %cst_7 {dimension_numbers = #tpu.dot_dimension_numbers<[1], [1], [0], [0], [0, 0, 1, 0], [], []>} : vector<8x8xbf16>, vector<16x8xbf16>, vector<8x16xf32> -> vector<8x16xf32>
    %c0_8 = arith.constant 0 : index
    %c0_9 = arith.constant 0 : index
    %14 = vector.load %arg11[%c0_8, %c0_9] : memref<8x4xf32, #tpu.memory_space<vmem>>, vector<8x1xf32>
    %cst_10 = arith.constant dense<0xFF800000> : vector<8xf32>
    %15 = vector.multi_reduction <maximumf>, %13, %cst_10 [1] : vector<8x16xf32> to vector<8xf32>
    %16 = vector.shape_cast %15 : vector<8xf32> to vector<8x1xf32>
    %17 = arith.maximumf %14, %16 : vector<8x1xf32>
    %18 = arith.subf %14, %17 : vector<8x1xf32>
    %19 = math.exp %18 : vector<8x1xf32>
    %20 = vector.broadcast %17 : vector<8x1xf32> to vector<8x16xf32>
    %21 = arith.subf %13, %20 : vector<8x16xf32>
    %22 = math.exp %21 : vector<8x16xf32>
    %c0_11 = arith.constant 0 : index
    %c0_12 = arith.constant 0 : index
    %23 = vector.load %arg12[%c0_11, %c0_12] : memref<8x4xf32, #tpu.memory_space<vmem>>, vector<8x1xf32>
    %24 = arith.mulf %19, %23 : vector<8x1xf32>
    %cst_13 = arith.constant dense<0.000000e+00> : vector<8xf32>
    %25 = vector.multi_reduction <add>, %22, %cst_13 [1] : vector<8x16xf32> to vector<8xf32>
    %26 = vector.shape_cast %25 : vector<8xf32> to vector<8x1xf32>
    %27 = arith.addf %24, %26 : vector<8x1xf32>
    %c0_14 = arith.constant 0 : index
    %c0_15 = arith.constant 0 : index
    %28 = vector.load %arg12[%c0_14, %c0_15] : memref<8x4xf32, #tpu.memory_space<vmem>>, vector<8x1xf32>
    tpu.vector_store %arg12[%c0_14, %c0_15], %27 {strides = array<i32>} : memref<8x4xf32, #tpu.memory_space<vmem>>, vector<8x1xf32>,
    %29 = arith.truncf %22 : vector<8x16xf32> to vector<8x16xbf16>
    %cst_16 = arith.constant dense<0.000000e+00> : vector<8x8xf32>
    %30 = tpu.matmul %29, %11, %cst_16 {dimension_numbers = #tpu.dot_dimension_numbers<[1], [0], [0], [1], [0, 0, 1, 1], [], []>} : vector<8x16xbf16>, vector<16x8xbf16>, vector<8x8xf32> -> vector<8x8xf32>
    %c0_17 = arith.constant 0 : index
    %c0_18 = arith.constant 0 : index
    %31 = vector.load %arg13[%c0_17, %c0_18] : memref<8x32xf32, #tpu.memory_space<vmem>>, vector<8x8xf32>
    %32 = vector.broadcast %19 : vector<8x1xf32> to vector<8x8xf32>
    %33 = arith.mulf %32, %31 : vector<8x8xf32>
    %34 = arith.addf %33, %30 : vector<8x8xf32>
    %c0_19 = arith.constant 0 : index
    %c0_20 = arith.constant 0 : index
    %35 = vector.load %arg13[%c0_19, %c0_20] : memref<8x32xf32, #tpu.memory_space<vmem>>, vector<8x8xf32>
    tpu.vector_store %arg13[%c0_19, %c0_20], %34 {strides = array<i32>} : memref<8x32xf32, #tpu.memory_space<vmem>>, vector<8x8xf32>,
    %c0_21 = arith.constant 0 : index
    %c0_22 = arith.constant 0 : index
    %36 = vector.load %arg11[%c0_21, %c0_22] : memref<8x4xf32, #tpu.memory_space<vmem>>, vector<8x1xf32>
    tpu.vector_store %arg11[%c0_21, %c0_22], %17 {strides = array<i32>} : memref<8x4xf32, #tpu.memory_space<vmem>>, vector<8x1xf32>,
    %37 = vector.extract_strided_slice %6 {offsets = [0, 8], sizes = [16, 8], strides = [1, 1]} : vector<16x64xf32> to vector<16x8xf32>
    %38 = arith.truncf %37 : vector<16x8xf32> to vector<16x8xbf16>
    %39 = vector.extract_strided_slice %6 {offsets = [0, 40], sizes = [16, 8], strides = [1, 1]} : vector<16x64xf32> to vector<16x8xf32>
    %40 = arith.truncf %39 : vector<16x8xf32> to vector<16x8xbf16>
    %41 = vector.extract_strided_slice %7 {offsets = [0, 8], sizes = [8, 8], strides = [1, 1]} : vector<8x32xbf16> to vector<8x8xbf16>
    %cst_23 = arith.constant dense<0.000000e+00> : vector<8x16xf32>
    %42 = tpu.matmul %41, %38, %cst_23 {dimension_numbers = #tpu.dot_dimension_numbers<[1], [1], [0], [0], [0, 0, 1, 0], [], []>} : vector<8x8xbf16>, vector<16x8xbf16>, vector<8x16xf32> -> vector<8x16xf32>
    %c0_24 = arith.constant 0 : index
    %c1 = arith.constant 1 : index
    %43 = vector.load %arg11[%c0_24, %c1] : memref<8x4xf32, #tpu.memory_space<vmem>>, vector<8x1xf32>
    %cst_25 = arith.constant dense<0xFF800000> : vector<8xf32>
    %44 = vector.multi_reduction <maximumf>, %42, %cst_25 [1] : vector<8x16xf32> to vector<8xf32>
    %45 = vector.shape_cast %44 : vector<8xf32> to vector<8x1xf32>
    %46 = arith.maximumf %43, %45 : vector<8x1xf32>
    %47 = arith.subf %43, %46 : vector<8x1xf32>
    %48 = math.exp %47 : vector<8x1xf32>
    %49 = vector.broadcast %46 : vector<8x1xf32> to vector<8x16xf32>
    %50 = arith.subf %42, %49 : vector<8x16xf32>
    %51 = math.exp %50 : vector<8x16xf32>
    %c0_26 = arith.constant 0 : index
    %c1_27 = arith.constant 1 : index
    %52 = vector.load %arg12[%c0_26, %c1_27] : memref<8x4xf32, #tpu.memory_space<vmem>>, vector<8x1xf32>
    %53 = arith.mulf %48, %52 : vector<8x1xf32>
    %cst_28 = arith.constant dense<0.000000e+00> : vector<8xf32>
    %54 = vector.multi_reduction <add>, %51, %cst_28 [1] : vector<8x16xf32> to vector<8xf32>
    %55 = vector.shape_cast %54 : vector<8xf32> to vector<8x1xf32>
    %56 = arith.addf %53, %55 : vector<8x1xf32>
    %c0_29 = arith.constant 0 : index
    %c1_30 = arith.constant 1 : index
    %57 = vector.load %arg12[%c0_29, %c1_30] : memref<8x4xf32, #tpu.memory_space<vmem>>, vector<8x1xf32>
    tpu.vector_store %arg12[%c0_29, %c1_30], %56 {strides = array<i32>} : memref<8x4xf32, #tpu.memory_space<vmem>>, vector<8x1xf32>,
    %58 = arith.truncf %51 : vector<8x16xf32> to vector<8x16xbf16>
    %cst_31 = arith.constant dense<0.000000e+00> : vector<8x8xf32>
    %59 = tpu.matmul %58, %40, %cst_31 {dimension_numbers = #tpu.dot_dimension_numbers<[1], [0], [0], [1], [0, 0, 1, 1], [], []>} : vector<8x16xbf16>, vector<16x8xbf16>, vector<8x8xf32> -> vector<8x8xf32>
    %c0_32 = arith.constant 0 : index
    %c8 = arith.constant 8 : index
    %60 = vector.load %arg13[%c0_32, %c8] : memref<8x32xf32, #tpu.memory_space<vmem>>, vector<8x8xf32>
    %61 = vector.broadcast %48 : vector<8x1xf32> to vector<8x8xf32>
    %62 = arith.mulf %61, %60 : vector<8x8xf32>
    %63 = arith.addf %62, %59 : vector<8x8xf32>
    %c0_33 = arith.constant 0 : index
    %c8_34 = arith.constant 8 : index
    %64 = vector.load %arg13[%c0_33, %c8_34] : memref<8x32xf32, #tpu.memory_space<vmem>>, vector<8x8xf32>
    tpu.vector_store %arg13[%c0_33, %c8_34], %63 {strides = array<i32>} : memref<8x32xf32, #tpu.memory_space<vmem>>, vector<8x8xf32>,
    %c0_35 = arith.constant 0 : index
    %c1_36 = arith.constant 1 : index
    %65 = vector.load %arg11[%c0_35, %c1_36] : memref<8x4xf32, #tpu.memory_space<vmem>>, vector<8x1xf32>
    tpu.vector_store %arg11[%c0_35, %c1_36], %46 {strides = array<i32>} : memref<8x4xf32, #tpu.memory_space<vmem>>, vector<8x1xf32>,
    %66 = vector.extract_strided_slice %6 {offsets = [0, 16], sizes = [16, 8], strides = [1, 1]} : vector<16x64xf32> to vector<16x8xf32>
    %67 = arith.truncf %66 : vector<16x8xf32> to vector<16x8xbf16>
    %68 = vector.extract_strided_slice %6 {offsets = [0, 48], sizes = [16, 8], strides = [1, 1]} : vector<16x64xf32> to vector<16x8xf32>
    %69 = arith.truncf %68 : vector<16x8xf32> to vector<16x8xbf16>
    %70 = vector.extract_strided_slice %7 {offsets = [0, 16], sizes = [8, 8], strides = [1, 1]} : vector<8x32xbf16> to vector<8x8xbf16>
    %cst_37 = arith.constant dense<0.000000e+00> : vector<8x16xf32>
    %71 = tpu.matmul %70, %67, %cst_37 {dimension_numbers = #tpu.dot_dimension_numbers<[1], [1], [0], [0], [0, 0, 1, 0], [], []>} : vector<8x8xbf16>, vector<16x8xbf16>, vector<8x16xf32> -> vector<8x16xf32>
    %c0_38 = arith.constant 0 : index
    %c2 = arith.constant 2 : index
    %72 = vector.load %arg11[%c0_38, %c2] : memref<8x4xf32, #tpu.memory_space<vmem>>, vector<8x1xf32>
    %cst_39 = arith.constant dense<0xFF800000> : vector<8xf32>
    %73 = vector.multi_reduction <maximumf>, %71, %cst_39 [1] : vector<8x16xf32> to vector<8xf32>
    %74 = vector.shape_cast %73 : vector<8xf32> to vector<8x1xf32>
    %75 = arith.maximumf %72, %74 : vector<8x1xf32>
    %76 = arith.subf %72, %75 : vector<8x1xf32>
    %77 = math.exp %76 : vector<8x1xf32>
    %78 = vector.broadcast %75 : vector<8x1xf32> to vector<8x16xf32>
    %79 = arith.subf %71, %78 : vector<8x16xf32>
    %80 = math.exp %79 : vector<8x16xf32>
    %c0_40 = arith.constant 0 : index
    %c2_41 = arith.constant 2 : index
    %81 = vector.load %arg12[%c0_40, %c2_41] : memref<8x4xf32, #tpu.memory_space<vmem>>, vector<8x1xf32>
    %82 = arith.mulf %77, %81 : vector<8x1xf32>
    %cst_42 = arith.constant dense<0.000000e+00> : vector<8xf32>
    %83 = vector.multi_reduction <add>, %80, %cst_42 [1] : vector<8x16xf32> to vector<8xf32>
    %84 = vector.shape_cast %83 : vector<8xf32> to vector<8x1xf32>
    %85 = arith.addf %82, %84 : vector<8x1xf32>
    %c0_43 = arith.constant 0 : index
    %c2_44 = arith.constant 2 : index
    %86 = vector.load %arg12[%c0_43, %c2_44] : memref<8x4xf32, #tpu.memory_space<vmem>>, vector<8x1xf32>
    tpu.vector_store %arg12[%c0_43, %c2_44], %85 {strides = array<i32>} : memref<8x4xf32, #tpu.memory_space<vmem>>, vector<8x1xf32>,
    %87 = arith.truncf %80 : vector<8x16xf32> to vector<8x16xbf16>
    %cst_45 = arith.constant dense<0.000000e+00> : vector<8x8xf32>
    %88 = tpu.matmul %87, %69, %cst_45 {dimension_numbers = #tpu.dot_dimension_numbers<[1], [0], [0], [1], [0, 0, 1, 1], [], []>} : vector<8x16xbf16>, vector<16x8xbf16>, vector<8x8xf32> -> vector<8x8xf32>
    %c0_46 = arith.constant 0 : index
    %c16 = arith.constant 16 : index
    %89 = vector.load %arg13[%c0_46, %c16] : memref<8x32xf32, #tpu.memory_space<vmem>>, vector<8x8xf32>
    %90 = vector.broadcast %77 : vector<8x1xf32> to vector<8x8xf32>
    %91 = arith.mulf %90, %89 : vector<8x8xf32>
    %92 = arith.addf %91, %88 : vector<8x8xf32>
    %c0_47 = arith.constant 0 : index
    %c16_48 = arith.constant 16 : index
    %93 = vector.load %arg13[%c0_47, %c16_48] : memref<8x32xf32, #tpu.memory_space<vmem>>, vector<8x8xf32>
    tpu.vector_store %arg13[%c0_47, %c16_48], %92 {strides = array<i32>} : memref<8x32xf32, #tpu.memory_space<vmem>>, vector<8x8xf32>,
    %c0_49 = arith.constant 0 : index
    %c2_50 = arith.constant 2 : index
    %94 = vector.load %arg11[%c0_49, %c2_50] : memref<8x4xf32, #tpu.memory_space<vmem>>, vector<8x1xf32>
    tpu.vector_store %arg11[%c0_49, %c2_50], %75 {strides = array<i32>} : memref<8x4xf32, #tpu.memory_space<vmem>>, vector<8x1xf32>,
    %95 = vector.extract_strided_slice %6 {offsets = [0, 24], sizes = [16, 8], strides = [1, 1]} : vector<16x64xf32> to vector<16x8xf32>
    %96 = arith.truncf %95 : vector<16x8xf32> to vector<16x8xbf16>
    %97 = vector.extract_strided_slice %6 {offsets = [0, 56], sizes = [16, 8], strides = [1, 1]} : vector<16x64xf32> to vector<16x8xf32>
    %98 = arith.truncf %97 : vector<16x8xf32> to vector<16x8xbf16>
    %99 = vector.extract_strided_slice %7 {offsets = [0, 24], sizes = [8, 8], strides = [1, 1]} : vector<8x32xbf16> to vector<8x8xbf16>
    %cst_51 = arith.constant dense<0.000000e+00> : vector<8x16xf32>
    %100 = tpu.matmul %99, %96, %cst_51 {dimension_numbers = #tpu.dot_dimension_numbers<[1], [1], [0], [0], [0, 0, 1, 0], [], []>} : vector<8x8xbf16>, vector<16x8xbf16>, vector<8x16xf32> -> vector<8x16xf32>
    %c0_52 = arith.constant 0 : index
    %c3 = arith.constant 3 : index
    %101 = vector.load %arg11[%c0_52, %c3] : memref<8x4xf32, #tpu.memory_space<vmem>>, vector<8x1xf32>
    %cst_53 = arith.constant dense<0xFF800000> : vector<8xf32>
    %102 = vector.multi_reduction <maximumf>, %100, %cst_53 [1] : vector<8x16xf32> to vector<8xf32>
    %103 = vector.shape_cast %102 : vector<8xf32> to vector<8x1xf32>
    %104 = arith.maximumf %101, %103 : vector<8x1xf32>
    %105 = arith.subf %101, %104 : vector<8x1xf32>
    %106 = math.exp %105 : vector<8x1xf32>
    %107 = vector.broadcast %104 : vector<8x1xf32> to vector<8x16xf32>
    %108 = arith.subf %100, %107 : vector<8x16xf32>
    %109 = math.exp %108 : vector<8x16xf32>
    %c0_54 = arith.constant 0 : index
    %c3_55 = arith.constant 3 : index
    %110 = vector.load %arg12[%c0_54, %c3_55] : memref<8x4xf32, #tpu.memory_space<vmem>>, vector<8x1xf32>
    %111 = arith.mulf %106, %110 : vector<8x1xf32>
    %cst_56 = arith.constant dense<0.000000e+00> : vector<8xf32>
    %112 = vector.multi_reduction <add>, %109, %cst_56 [1] : vector<8x16xf32> to vector<8xf32>
    %113 = vector.shape_cast %112 : vector<8xf32> to vector<8x1xf32>
    %114 = arith.addf %111, %113 : vector<8x1xf32>
    %c0_57 = arith.constant 0 : index
    %c3_58 = arith.constant 3 : index
    %115 = vector.load %arg12[%c0_57, %c3_58] : memref<8x4xf32, #tpu.memory_space<vmem>>, vector<8x1xf32>
    tpu.vector_store %arg12[%c0_57, %c3_58], %114 {strides = array<i32>} : memref<8x4xf32, #tpu.memory_space<vmem>>, vector<8x1xf32>,
    %116 = arith.truncf %109 : vector<8x16xf32> to vector<8x16xbf16>
    %cst_59 = arith.constant dense<0.000000e+00> : vector<8x8xf32>
    %117 = tpu.matmul %116, %98, %cst_59 {dimension_numbers = #tpu.dot_dimension_numbers<[1], [0], [0], [1], [0, 0, 1, 1], [], []>} : vector<8x16xbf16>, vector<16x8xbf16>, vector<8x8xf32> -> vector<8x8xf32>
    %c0_60 = arith.constant 0 : index
    %c24 = arith.constant 24 : index
    %118 = vector.load %arg13[%c0_60, %c24] : memref<8x32xf32, #tpu.memory_space<vmem>>, vector<8x8xf32>
    %119 = vector.broadcast %106 : vector<8x1xf32> to vector<8x8xf32>
    %120 = arith.mulf %119, %118 : vector<8x8xf32>
    %121 = arith.addf %120, %117 : vector<8x8xf32>
    %c0_61 = arith.constant 0 : index
    %c24_62 = arith.constant 24 : index
    %122 = vector.load %arg13[%c0_61, %c24_62] : memref<8x32xf32, #tpu.memory_space<vmem>>, vector<8x8xf32>
    tpu.vector_store %arg13[%c0_61, %c24_62], %121 {strides = array<i32>} : memref<8x32xf32, #tpu.memory_space<vmem>>, vector<8x8xf32>,
    %c0_63 = arith.constant 0 : index
    %c3_64 = arith.constant 3 : index
    %123 = vector.load %arg11[%c0_63, %c3_64] : memref<8x4xf32, #tpu.memory_space<vmem>>, vector<8x1xf32>
    tpu.vector_store %arg11[%c0_63, %c3_64], %104 {strides = array<i32>} : memref<8x4xf32, #tpu.memory_space<vmem>>, vector<8x1xf32>,
    %c1_i32 = arith.constant 1 : i32
    %124 = arith.cmpi eq, %arg2, %c1_i32 : i32
    %125 = arith.extui %124 : i1 to i32
    %c0_i32_65 = arith.constant 0 : i32
    %126 = arith.cmpi ne, %125, %c0_i32_65 : i32
    scf.if %126 {
      %c0_66 = arith.constant 0 : index
      %c0_67 = arith.constant 0 : index
      %127 = vector.load %arg13[%c0_66, %c0_67] : memref<8x32xf32, #tpu.memory_space<vmem>>, vector<8x8xf32>
      %c0_68 = arith.constant 0 : index
      %c0_69 = arith.constant 0 : index
      %128 = vector.load %arg12[%c0_68, %c0_69] : memref<8x4xf32, #tpu.memory_space<vmem>>, vector<8x1xf32>
      %cst_70 = arith.constant 1.000000e+00 : f32
      %129 = vector.broadcast %cst_70 : f32 to vector<8x1xf32>
      %130 = arith.divf %129, %128 : vector<8x1xf32>
      %131 = vector.broadcast %130 : vector<8x1xf32> to vector<8x8xf32>
      %132 = arith.mulf %127, %131 : vector<8x8xf32>
      %c0_71 = arith.constant 0 : index
      %c0_72 = arith.constant 0 : index
      %133 = vector.load %arg13[%c0_71, %c0_72] : memref<8x32xf32, #tpu.memory_space<vmem>>, vector<8x8xf32>
      tpu.vector_store %arg13[%c0_71, %c0_72], %132 {strides = array<i32>} : memref<8x32xf32, #tpu.memory_space<vmem>>, vector<8x8xf32>,
      %c0_73 = arith.constant 0 : index
      %c8_74 = arith.constant 8 : index
      %134 = vector.load %arg13[%c0_73, %c8_74] : memref<8x32xf32, #tpu.memory_space<vmem>>, vector<8x8xf32>
      %c0_75 = arith.constant 0 : index
      %c1_76 = arith.constant 1 : index
      %135 = vector.load %arg12[%c0_75, %c1_76] : memref<8x4xf32, #tpu.memory_space<vmem>>, vector<8x1xf32>
      %cst_77 = arith.constant 1.000000e+00 : f32
      %136 = vector.broadcast %cst_77 : f32 to vector<8x1xf32>
      %137 = arith.divf %136, %135 : vector<8x1xf32>
      %138 = vector.broadcast %137 : vector<8x1xf32> to vector<8x8xf32>
      %139 = arith.mulf %134, %138 : vector<8x8xf32>
      %c0_78 = arith.constant 0 : index
      %c8_79 = arith.constant 8 : index
      %140 = vector.load %arg13[%c0_78, %c8_79] : memref<8x32xf32, #tpu.memory_space<vmem>>, vector<8x8xf32>
      tpu.vector_store %arg13[%c0_78, %c8_79], %139 {strides = array<i32>} : memref<8x32xf32, #tpu.memory_space<vmem>>, vector<8x8xf32>,
      %c0_80 = arith.constant 0 : index
      %c16_81 = arith.constant 16 : index
      %141 = vector.load %arg13[%c0_80, %c16_81] : memref<8x32xf32, #tpu.memory_space<vmem>>, vector<8x8xf32>
      %c0_82 = arith.constant 0 : index
      %c2_83 = arith.constant 2 : index
      %142 = vector.load %arg12[%c0_82, %c2_83] : memref<8x4xf32, #tpu.memory_space<vmem>>, vector<8x1xf32>
      %cst_84 = arith.constant 1.000000e+00 : f32
      %143 = vector.broadcast %cst_84 : f32 to vector<8x1xf32>
      %144 = arith.divf %143, %142 : vector<8x1xf32>
      %145 = vector.broadcast %144 : vector<8x1xf32> to vector<8x8xf32>
      %146 = arith.mulf %141, %145 : vector<8x8xf32>
      %c0_85 = arith.constant 0 : index
      %c16_86 = arith.constant 16 : index
      %147 = vector.load %arg13[%c0_85, %c16_86] : memref<8x32xf32, #tpu.memory_space<vmem>>, vector<8x8xf32>
      tpu.vector_store %arg13[%c0_85, %c16_86], %146 {strides = array<i32>} : memref<8x32xf32, #tpu.memory_space<vmem>>, vector<8x8xf32>,
      %c0_87 = arith.constant 0 : index
      %c24_88 = arith.constant 24 : index
      %148 = vector.load %arg13[%c0_87, %c24_88] : memref<8x32xf32, #tpu.memory_space<vmem>>, vector<8x8xf32>
      %c0_89 = arith.constant 0 : index
      %c3_90 = arith.constant 3 : index
      %149 = vector.load %arg12[%c0_89, %c3_90] : memref<8x4xf32, #tpu.memory_space<vmem>>, vector<8x1xf32>
      %cst_91 = arith.constant 1.000000e+00 : f32
      %150 = vector.broadcast %cst_91 : f32 to vector<8x1xf32>
      %151 = arith.divf %150, %149 : vector<8x1xf32>
      %152 = vector.broadcast %151 : vector<8x1xf32> to vector<8x8xf32>
      %153 = arith.mulf %148, %152 : vector<8x8xf32>
      %c0_92 = arith.constant 0 : index
      %c24_93 = arith.constant 24 : index
      %154 = vector.load %arg13[%c0_92, %c24_93] : memref<8x32xf32, #tpu.memory_space<vmem>>, vector<8x8xf32>
      tpu.vector_store %arg13[%c0_92, %c24_93], %153 {strides = array<i32>} : memref<8x32xf32, #tpu.memory_space<vmem>>, vector<8x8xf32>,
      %c0_94 = arith.constant 0 : index
      %c0_95 = arith.constant 0 : index
      %155 = vector.load %arg13[%c0_94, %c0_95] : memref<8x32xf32, #tpu.memory_space<vmem>>, vector<8x32xf32>
      %156 = arith.truncf %155 : vector<8x32xf32> to vector<8x32xbf16>
      %c0_96 = arith.constant 0 : index
      %c0_97 = arith.constant 0 : index
      %157 = vector.load %arg8[%c0_96, %c0_97] : memref<32x32xbf16, #tpu.memory_space<vmem>>, vector<32x32xbf16>
      %cst_98 = arith.constant dense<0.000000e+00> : vector<8x32xf32>
      %158 = tpu.matmul %156, %157, %cst_98 {dimension_numbers = #tpu.dot_dimension_numbers<[1], [0], [0], [1], [0, 0, 1, 1], [], []>} : vector<8x32xbf16>, vector<32x32xbf16>, vector<8x32xf32> -> vector<8x32xf32>
      %c0_99 = arith.constant 0 : index
      %c0_100 = arith.constant 0 : index
      %c0_101 = arith.constant 0 : index
      %159 = vector.load %arg3[%c0_99, %c0_100, %c0_101] : memref<1x8x32xf32, #tpu.memory_space<vmem>>, vector<1x8x32xf32>
      %160 = vector.shape_cast %159 : vector<1x8x32xf32> to vector<8x32xf32>
      %161 = arith.addf %160, %158 : vector<8x32xf32>
      %c0_102 = arith.constant 0 : index
      %c0_103 = arith.constant 0 : index
      %c0_104 = arith.constant 0 : index
      %162 = vector.load %arg9[%c0_102, %c0_103, %c0_104] : memref<1x8x32xf32, #tpu.memory_space<vmem>>, vector<1x8x32xf32>
      %163 = vector.shape_cast %162 : vector<1x8x32xf32> to vector<8x32xf32>
      %164 = vector.shape_cast %161 : vector<8x32xf32> to vector<1x8x32xf32>
      tpu.vector_store %arg9[%c0_102, %c0_103, %c0_104], %164 {strides = array<i32>} : memref<1x8x32xf32, #tpu.memory_space<vmem>>, vector<1x8x32xf32>,
    } else {
    }
    return
  }
  func.func @transform_0(%arg0: i32, %arg1: i32, %arg2: i32) -> (i32, i32, i32) {
    %c0_i32 = arith.constant 0 : i32
    %c0_i32_0 = arith.constant 0 : i32
    return %arg0, %arg1, %c0_i32 : i32, i32, i32
  }
  func.func @transform_1(%arg0: i32, %arg1: i32, %arg2: i32) -> (i32, i32, i32) {
    %c0_i32 = arith.constant 0 : i32
    %c0_i32_0 = arith.constant 0 : i32
    return %arg0, %arg2, %c0_i32 : i32, i32, i32
  }
  func.func @transform_2(%arg0: i32, %arg1: i32, %arg2: i32) -> (i32, i32) {
    %c0_i32 = arith.constant 0 : i32
    %c0_i32_0 = arith.constant 0 : i32
    %c0_i32_1 = arith.constant 0 : i32
    return %c0_i32, %c0_i32_0 : i32, i32
  }
  func.func @transform_3(%arg0: i32, %arg1: i32, %arg2: i32) -> (i32, i32) {
    %c0_i32 = arith.constant 0 : i32
    %c0_i32_0 = arith.constant 0 : i32
    %c0_i32_1 = arith.constant 0 : i32
    return %c0_i32, %c0_i32_0 : i32, i32
  }
  func.func @transform_4(%arg0: i32, %arg1: i32, %arg2: i32) -> (i32, i32) {
    %c0_i32 = arith.constant 0 : i32
    %c0_i32_0 = arith.constant 0 : i32
    %c0_i32_1 = arith.constant 0 : i32
    return %c0_i32, %c0_i32_0 : i32, i32
  }
  func.func @transform_5(%arg0: i32, %arg1: i32, %arg2: i32) -> (i32, i32) {
    %c0_i32 = arith.constant 0 : i32
    %c0_i32_0 = arith.constant 0 : i32
    %c0_i32_1 = arith.constant 0 : i32
    return %c0_i32, %c0_i32_0 : i32, i32
  }
  func.func @transform_6(%arg0: i32, %arg1: i32, %arg2: i32) -> (i32, i32, i32) {
    %c0_i32 = arith.constant 0 : i32
    %c0_i32_0 = arith.constant 0 : i32
    return %arg0, %arg1, %c0_i32 : i32, i32, i32
  }
}

</mosaic_0001>

<llo_original>
// kernel: tpu_custom_call.1
$region0: #{tpu_custom_call.1}
  #allocation0 [shape = 'u32[]', space=smem, size = 0x4, offset = 0x4, fixed_abs, tag = 'smem constant byte address 0x4 - core index']
  #allocation1 [shape = 'u32[144,128]{1,0:T(1,128)}', space=vmem, size = 0x12000, scoped, tag = 'internal scratch']
  #allocation2 [shape = 'bf16[8,32]{1,0:T(8,128)(2,1)}', space=vmem, size = 0x800, scoped, tag = 'scratch operand']
  #allocation3 [shape = 'f32[8,4]{1,0:T(8,128)}', space=vmem, size = 0x1000, scoped, tag = 'scratch operand']
  #allocation4 [shape = 'f32[8,4]{1,0:T(8,128)}', space=vmem, size = 0x1000, scoped, tag = 'scratch operand']
  #allocation5 [shape = 'f32[8,32]{1,0:T(8,128)}', space=vmem, size = 0x1000, scoped, tag = 'scratch operand']
  %s0 = inlined_call_operand.hbm [shape: f32[2,16,32], index: 0, kind: input, shape index: {}]
  %s1 = inlined_call_operand.hbm [shape: bf16[2,32,32], index: 1, kind: input, shape index: {}]
  %s2 = inlined_call_operand.vmem [shape: f32[1,32], index: 2, kind: input, shape index: {}]
  %s3 = inlined_call_operand.hbm [shape: bf16[32,32], index: 3, kind: input, shape index: {}]
  %s4 = inlined_call_operand.hbm [shape: bf16[32,64], index: 4, kind: input, shape index: {}]
  %s5 = inlined_call_operand.vmem [shape: bf16[32,32], index: 5, kind: input, shape index: {}]
  %s6 = inlined_call_operand.hbm [shape: f32[2,16,32], index: 6, kind: output, shape index: {}]
  %s7 = sld [smem:[#allocation0]]
  $region81: #{tpu_custom_call.1} parent=0
    _
  %s9 = ssub.s32 1, %s7
  %s10 = scalar_select 0, %s9, %s7
  $region1: #{tpu_custom_call.1} parent=0
    #allocation6 [shape = 'u8[8192]{0}', space=vmem, size = 0x2000, scoped, tag = 'input window, operand 0']
    #allocation7 [shape = 's32[2]{0}', space=sflag, size = 0x8, scoped, tag = 'scoped memory for tpu_custom_call.1']
    #allocation8 [shape = 's32[2]{0}', space=sflag, size = 0x8, scoped, tag = 'scoped memory for tpu_custom_call.1']
    #allocation9 [shape = 'u8[8192]{0}', space=vmem, size = 0x2000, scoped, tag = 'input window, operand 1']
    #allocation10 [shape = 's32[2]{0}', space=sflag, size = 0x8, scoped, tag = 'scoped memory for tpu_custom_call.1']
    #allocation11 [shape = 'u8[8192]{0}', space=vmem, size = 0x2000, scoped, tag = 'input window, operand 3, single buffered']
    #allocation12 [shape = 'u8[8192]{0}', space=vmem, size = 0x2000, scoped, tag = 'input window, operand 4, single buffered']
    #allocation13 [shape = 's32[1]{0}', space=sflag, size = 0x4, scoped, tag = 'scoped memory for tpu_custom_call.1']
    #allocation14 [shape = 'u8[8192]{0}', space=vmem, size = 0x2000, scoped, tag = 'output window, operand 0']
    %11 = vsyncpa [#allocation7], 0
    %s12 = scalar_lea.sflag [#allocation7], 1
    %13 = vsyncpa %s12, 0
    %14 = vsyncpa [#allocation10], 0
    %s15 = scalar_lea.sflag [#allocation10], 1
    %16 = vsyncpa %s15, 0
    %17 = vsyncpa [#allocation13], 0
    %18 = vsyncpa [#allocation8], 0
    %s19 = scalar_lea.sflag [#allocation8], 1
    %20 = vsyncpa %s19, 0
    loop: start=0, step=1, limit=10
    $region2: #{tpu_custom_call.1} parent=1 // loop_pre_header
      _
    $region3: #{tpu_custom_call.1} parent=1 // loop_header
      %s22 = sphi 0, %s26
      %p23 = scmp.ge.s32.totalorder %s22, 10
      %s29 = sphi 0, %s48
      %s30 = sphi 0, %s44
      %s31 = sphi 0, %s40
      %s32 = sphi 0, %s29
      %s33 = sphi 0, %s30
      %s34 = sphi 0, %s31
      %s35 = sphi 0, %s32
      %s36 = sphi 0, %s33
      %s37 = sphi 0, %s34
      %s53 = sphi 0, %s55
      %s56 = sphi 0, %s53
      %s57 = sphi 0, %s56
      %s73 = sphi 0, %s57
      %s81 = sphi 0, %s83
      %s84 = sphi 0, %s81
      %s85 = sphi 0, %s84
      %s101 = sphi 0, %s85
      %s105 = sphi 0, %s105
      %s107 = sphi 0, %s105
      %s108 = sphi 0, %s107
      %s122 = sphi 0, %s108
      %s126 = sphi 0, %s126
      %s128 = sphi 0, %s126
      %s129 = sphi 0, %s128
      %s143 = sphi 0, %s129
      %s147 = sphi 0, %s147
      %s149 = sphi 0, %s147
      %s150 = sphi 0, %s149
      %s164 = sphi 0, %s150
      %s168 = sphi 0, %s168
      %s170 = sphi 0, %s168
      %s171 = sphi 0, %s170
      %s185 = sphi 0, %s171
      %s193 = sphi 0, %s195
      %s196 = sphi 0, %s193
      %s197 = sphi 0, %s196
      %s213 = sphi 0, %s197
    $region4: #{tpu_custom_call.1} parent=1 // loop_header_branch
      %25 = sbr.rel (%p23) target = $region8
    $region5: #{tpu_custom_call.1} parent=1 // loop_body
      %s27 = ssub.s32 %s22, 1
      %s28 = ssub.s32 %s22, 2
      %s38 = sadd.s32 1, %s31
      %p39 = scmp.ge.s32.totalorder %s38, 2
      %s40 = scalar_select %p39, 0, %s38
      %s41 = sadd.s32 1, %s30
      %s42 = scalar_select %p39, %s41, %s30
      %p43 = scmp.ge.s32.totalorder %s42, 2
      %s44 = scalar_select %p43, 0, %s42
      %s45 = sadd.s32 1, %s29
      %s46 = scalar_select %p43, %s45, %s29
      %p47 = scmp.ge.s32.totalorder %s46, 2
      %s48 = scalar_select %p47, 0, %s46
      %s49 = ssub.s32 %s29, %s48
      %s50 = ssub.s32 %s30, %s44
      %s51 = sor.u32 %s49, %s50
      %p52 = scmp.eq.s32.totalorder %s51, 0
      %s54 = sadd.s32 %s53, 1
      %s55 = scalar_select %p52, %s53, %s54
      %p58 = pneg %p52
      %p59 = scmp.eq.s32.totalorder %s22, 7
      %p60 = por %p58, %p59
      %p61 = scmp.ne.s32.totalorder %s53, %s56
      %p62 = scmp.eq.s32.totalorder %s22, 0
      %p63 = por %p61, %p62
      %p64 = scmp.ne.s32.totalorder %s53, %s56
      %p65 = scmp.eq.s32.totalorder %s27, 7
      %p66 = por %p64, %p65
      %p67 = scmp.ne.s32.totalorder %s56, %s57
      %p68 = scmp.eq.s32.totalorder %s27, 0
      %p69 = por %p67, %p68
      %p70 = scmp.ne.s32.totalorder %s56, %s57
      %p71 = scmp.eq.s32.totalorder %s28, 7
      %p72 = por %p70, %p71
      %p74 = scmp.ne.s32.totalorder %s57, %s73
      %p75 = scmp.eq.s32.totalorder %s28, 0
      %p76 = por %p74, %p75
      %s77 = ssub.s32 %s29, %s48
      %s78 = ssub.s32 %s31, %s40
      %s79 = sor.u32 %s77, %s78
      %p80 = scmp.eq.s32.totalorder %s79, 0
      %s82 = sadd.s32 %s81, 1
      %s83 = scalar_select %p80, %s81, %s82
      %p86 = pneg %p80
      %p87 = scmp.eq.s32.totalorder %s22, 7
      %p88 = por %p86, %p87
      %p89 = scmp.ne.s32.totalorder %s81, %s84
      %p90 = scmp.eq.s32.totalorder %s22, 0
      %p91 = por %p89, %p90
      %p92 = scmp.ne.s32.totalorder %s81, %s84
      %p93 = scmp.eq.s32.totalorder %s27, 7
      %p94 = por %p92, %p93
      %p95 = scmp.ne.s32.totalorder %s84, %s85
      %p96 = scmp.eq.s32.totalorder %s27, 0
      %p97 = por %p95, %p96
      %p98 = scmp.ne.s32.totalorder %s84, %s85
      %p99 = scmp.eq.s32.totalorder %s28, 7
      %p100 = por %p98, %p99
      %p102 = scmp.ne.s32.totalorder %s85, %s101
      %p103 = scmp.eq.s32.totalorder %s28, 0
      %p104 = por %p102, %p103
      %s106 = sadd.s32 %s105, 1
      %p109 = scmp.eq.s32.totalorder %s22, 7
      %p110 = scmp.ne.s32.totalorder %s105, %s107
      %p111 = scmp.eq.s32.totalorder %s22, 0
      %p112 = por %p110, %p111
      %p113 = scmp.ne.s32.totalorder %s105, %s107
      %p114 = scmp.eq.s32.totalorder %s27, 7
      %p115 = por %p113, %p114
      %p116 = scmp.ne.s32.totalorder %s107, %s108
      %p117 = scmp.eq.s32.totalorder %s27, 0
      %p118 = por %p116, %p117
      %p119 = scmp.ne.s32.totalorder %s107, %s108
      %p120 = scmp.eq.s32.totalorder %s28, 7
      %p121 = por %p119, %p120
      %p123 = scmp.ne.s32.totalorder %s108, %s122
      %p124 = scmp.eq.s32.totalorder %s28, 0
      %p125 = por %p123, %p124
      %s127 = sadd.s32 %s126, 1
      %p130 = scmp.eq.s32.totalorder %s22, 7
      %p131 = scmp.ne.s32.totalorder %s126, %s128
      %p132 = scmp.eq.s32.totalorder %s22, 0
      %p133 = por %p131, %p132
      %p134 = scmp.ne.s32.totalorder %s126, %s128
      %p135 = scmp.eq.s32.totalorder %s27, 7
      %p136 = por %p134, %p135
      %p137 = scmp.ne.s32.totalorder %s128, %s129
      %p138 = scmp.eq.s32.totalorder %s27, 0
      %p139 = por %p137, %p138
      %p140 = scmp.ne.s32.totalorder %s128, %s129
      %p141 = scmp.eq.s32.totalorder %s28, 7
      %p142 = por %p140, %p141
      %p144 = scmp.ne.s32.totalorder %s129, %s143
      %p145 = scmp.eq.s32.totalorder %s28, 0
      %p146 = por %p144, %p145
      %s148 = sadd.s32 %s147, 1
      %p151 = scmp.eq.s32.totalorder %s22, 7
      %p152 = scmp.ne.s32.totalorder %s147, %s149
      %p153 = scmp.eq.s32.totalorder %s22, 0
      %p154 = por %p152, %p153
      %p155 = scmp.ne.s32.totalorder %s147, %s149
      %p156 = scmp.eq.s32.totalorder %s27, 7
      %p157 = por %p155, %p156
      %p158 = scmp.ne.s32.totalorder %s149, %s150
      %p159 = scmp.eq.s32.totalorder %s27, 0
      %p160 = por %p158, %p159
      %p161 = scmp.ne.s32.totalorder %s149, %s150
      %p162 = scmp.eq.s32.totalorder %s28, 7
      %p163 = por %p161, %p162
      %p165 = scmp.ne.s32.totalorder %s150, %s164
      %p166 = scmp.eq.s32.totalorder %s28, 0
      %p167 = por %p165, %p166
      %s169 = sadd.s32 %s168, 1
      %p172 = scmp.eq.s32.totalorder %s22, 7
      %p173 = scmp.ne.s32.totalorder %s168, %s170
      %p174 = scmp.eq.s32.totalorder %s22, 0
      %p175 = por %p173, %p174
      %p176 = scmp.ne.s32.totalorder %s168, %s170
      %p177 = scmp.eq.s32.totalorder %s27, 7
      %p178 = por %p176, %p177
      %p179 = scmp.ne.s32.totalorder %s170, %s171
      %p180 = scmp.eq.s32.totalorder %s27, 0
      %p181 = por %p179, %p180
      %p182 = scmp.ne.s32.totalorder %s170, %s171
      %p183 = scmp.eq.s32.totalorder %s28, 7
      %p184 = por %p182, %p183
      %p186 = scmp.ne.s32.totalorder %s171, %s185
      %p187 = scmp.eq.s32.totalorder %s28, 0
      %p188 = por %p186, %p187
      %s189 = ssub.s32 %s29, %s48
      %s190 = ssub.s32 %s30, %s44
      %s191 = sor.u32 %s189, %s190
      %p192 = scmp.eq.s32.totalorder %s191, 0
      %s194 = sadd.s32 %s193, 1
      %s195 = scalar_select %p192, %s193, %s194
      %p198 = pneg %p192
      %p199 = scmp.eq.s32.totalorder %s22, 7
      %p200 = por %p198, %p199
      %p201 = scmp.ne.s32.totalorder %s193, %s196
      %p202 = scmp.eq.s32.totalorder %s22, 0
      %p203 = por %p201, %p202
      %p204 = scmp.ne.s32.totalorder %s193, %s196
      %p205 = scmp.eq.s32.totalorder %s27, 7
      %p206 = por %p204, %p205
      %p207 = scmp.ne.s32.totalorder %s196, %s197
      %p208 = scmp.eq.s32.totalorder %s27, 0
      %p209 = por %p207, %p208
      %p210 = scmp.ne.s32.totalorder %s196, %s197
      %p211 = scmp.eq.s32.totalorder %s28, 7
      %p212 = por %p210, %p211
      %p214 = scmp.ne.s32.totalorder %s197, %s213
      %p215 = scmp.eq.s32.totalorder %s28, 0
      %p216 = por %p214, %p215
      %p217 = scmp.le.s32.totalorder 1, %s22
      %p218 = scmp.lt.s32.totalorder %s22, 9
      %p219 = pnand %p217, %p218
      %p220 = pneg %p219
      // Predicated region
      $region9: #{tpu_custom_call.1} parent=5 // pred_check
        _
      $region10: #{tpu_custom_call.1} parent=5 // pred_check_branch
        %222 = sbr.rel (%p219) target = $region12
      $region11: #{tpu_custom_call.1} parent=5 // pred_region
        %s223 = ssub.s32 %s22, 1
        // Predicated region
        $region13: #{tpu_custom_call.1} parent=11 // pred_check
          %p224 = pneg %p118
        $region14: #{tpu_custom_call.1} parent=11 // pred_check_branch
          %226 = sbr.rel (%p224) target = $region16
        $region15: #{tpu_custom_call.1} parent=11 // pred_region
          _
        $region16: #{tpu_custom_call.1} parent=11 // pred_fallthru
          _
        // Predicated region
        $region17: #{tpu_custom_call.1} parent=11 // pred_check
          %p227 = pneg %p139
        $region18: #{tpu_custom_call.1} parent=11 // pred_check_branch
          %229 = sbr.rel (%p227) target = $region20
        $region19: #{tpu_custom_call.1} parent=11 // pred_region
          %s231 = ssub.s32 256, 256
          %232 = vsyncadd [#allocation10], %s231
          %s233 = sshll.u32 [#allocation11], 4
          %s234 = int_to_ptr.vmem [resolvable:$true] %s233
          %239 = dma.hbm_to_vmem [thread:$0]  %s3, 256, %s234, [#allocation10], 64, 64, 4
        $region20: #{tpu_custom_call.1} parent=11 // pred_fallthru
          _
        // Predicated region
        $region21: #{tpu_custom_call.1} parent=11 // pred_check
          %p240 = pneg %p160
        $region22: #{tpu_custom_call.1} parent=11 // pred_check_branch
          %242 = sbr.rel (%p240) target = $region24
        $region23: #{tpu_custom_call.1} parent=11 // pred_region
          %s244 = ssub.s32 256, 256
          %245 = vsyncadd [#allocation13], %s244
          %s246 = sshll.u32 [#allocation12], 4
          %s247 = int_to_ptr.vmem [resolvable:$true] %s246
          %252 = dma.hbm_to_vmem [thread:$0]  %s4, 256, %s247, [#allocation13], 64, 64, 4
        $region24: #{tpu_custom_call.1} parent=11 // pred_fallthru
          _
        // Predicated region
        $region25: #{tpu_custom_call.1} parent=11 // pred_check
          %p253 = pneg %p181
        $region26: #{tpu_custom_call.1} parent=11 // pred_check_branch
          %255 = sbr.rel (%p253) target = $region28
        $region27: #{tpu_custom_call.1} parent=11 // pred_region
          _
        $region28: #{tpu_custom_call.1} parent=11 // pred_fallthru
          _
      $region12: #{tpu_custom_call.1} parent=5 // pred_fallthru
        _
      %p256 = scmp.lt.s32.totalorder %s22, 8
      // Predicated region
      $region29: #{tpu_custom_call.1} parent=5 // pred_check
        %p257 = pneg %p256
      $region30: #{tpu_custom_call.1} parent=5 // pred_check_branch
        %259 = sbr.rel (%p257) target = $region32
      $region31: #{tpu_custom_call.1} parent=5 // pred_region
        // Predicated region
        $region33: #{tpu_custom_call.1} parent=31 // pred_check
          %p260 = pneg %p63
        $region34: #{tpu_custom_call.1} parent=31 // pred_check_branch
          %262 = sbr.rel (%p260) target = $region36
        $region35: #{tpu_custom_call.1} parent=31 // pred_region
          %s263 = sand.u32 %s53, 1
          %s264 = scalar_lea.sflag [#allocation7], %s263
          %s265 = sand.u32 %s53, 1
          %s266 = smul.addr %s265, 8
          %s267 = scalar_lea.vmem [#allocation6], %s266
          %s269 = ssub.s32 128, 128
          %270 = vsyncadd %s264, %s269
          %s271 = smul.addr %s29, 2
          %s272 = sadd.s32 %s30, %s271
          %s273 = smul.addr %s272, 128
          %s274 = scalar_lea.hbm %s0, %s273
          %s276 = sshll.u32 %s267, 4
          %s277 = int_to_ptr.vmem [resolvable:$true] %s276
          %279 = dma.hbm_to_vmem [thread:$0]  %s274, 128, %s277, %s264
        $region36: #{tpu_custom_call.1} parent=31 // pred_fallthru
          _
        // Predicated region
        $region37: #{tpu_custom_call.1} parent=31 // pred_check
          %p280 = pneg %p91
        $region38: #{tpu_custom_call.1} parent=31 // pred_check_branch
          %282 = sbr.rel (%p280) target = $region40
        $region39: #{tpu_custom_call.1} parent=31 // pred_region
          %s283 = sand.u32 %s22, 1
          %s284 = scalar_lea.sflag [#allocation10], %s283
          %s285 = sand.u32 %s81, 1
          %s286 = smul.addr %s285, 8
          %s287 = scalar_lea.vmem [#allocation9], %s286
          %s288 = smul.u32 2, %s31
          %s290 = ssub.s32 128, 128
          %291 = vsyncadd %s284, %s290
          %s292 = smul.addr %s29, 4
          %s293 = sadd.s32 %s288, %s292
          %s294 = smul.addr %s293, 64
          %s295 = scalar_lea.hbm %s1, %s294
          %s296 = sshll.u32 %s287, 4
          %s297 = int_to_ptr.vmem [resolvable:$true] %s296
          %302 = dma.hbm_to_vmem [thread:$0]  %s295, 128, %s297, %s284, 64, 64, 4
        $region40: #{tpu_custom_call.1} parent=31 // pred_fallthru
          _
      $region32: #{tpu_custom_call.1} parent=5 // pred_fallthru
        _
      %p303 = scmp.le.s32.totalorder 1, %s22
      %p304 = scmp.lt.s32.totalorder %s22, 9
      %p305 = pnand %p303, %p304
      %p306 = pneg %p305
      // Predicated region
      $region41: #{tpu_custom_call.1} parent=5 // pred_check
        _
      $region42: #{tpu_custom_call.1} parent=5 // pred_check_branch
        %308 = sbr.rel (%p305) target = $region44
      $region43: #{tpu_custom_call.1} parent=5 // pred_region
        %s309 = ssub.s32 %s22, 1
        %s310 = sand.u32 %s56, 1
        %s311 = scalar_lea.sflag [#allocation7], %s310
        %s312 = sand.u32 %s56, 1
        %s313 = smul.addr %s312, 8
        %s314 = scalar_lea.vmem [#allocation6], %s313
        // Predicated region
        $region45: #{tpu_custom_call.1} parent=43 // pred_check
          %p315 = pneg %p69
        $region46: #{tpu_custom_call.1} parent=43 // pred_check_branch
          %317 = sbr.rel (%p315) target = $region48
        $region47: #{tpu_custom_call.1} parent=43 // pred_region
          %318 = dma.done %s311, 128
        $region48: #{tpu_custom_call.1} parent=43 // pred_fallthru
          _
        %s319 = sand.u32 %s27, 1
        %s320 = scalar_lea.sflag [#allocation10], %s319
        %s321 = sand.u32 %s84, 1
        %s322 = smul.addr %s321, 8
        %s323 = scalar_lea.vmem [#allocation9], %s322
        // Predicated region
        $region49: #{tpu_custom_call.1} parent=43 // pred_check
          %p324 = pneg %p97
        $region50: #{tpu_custom_call.1} parent=43 // pred_check_branch
          %326 = sbr.rel (%p324) target = $region52
        $region51: #{tpu_custom_call.1} parent=43 // pred_region
          %327 = dma.done %s320, 128
        $region52: #{tpu_custom_call.1} parent=43 // pred_fallthru
          _
        // Predicated region
        $region53: #{tpu_custom_call.1} parent=43 // pred_check
          %p328 = pneg %p139
        $region54: #{tpu_custom_call.1} parent=43 // pred_check_branch
          %330 = sbr.rel (%p328) target = $region56
        $region55: #{tpu_custom_call.1} parent=43 // pred_region
          %331 = dma.done [#allocation10], 256
        $region56: #{tpu_custom_call.1} parent=43 // pred_fallthru
          _
        // Predicated region
        $region57: #{tpu_custom_call.1} parent=43 // pred_check
          %p332 = pneg %p160
        $region58: #{tpu_custom_call.1} parent=43 // pred_check_branch
          %334 = sbr.rel (%p332) target = $region60
        $region59: #{tpu_custom_call.1} parent=43 // pred_region
          %335 = dma.done [#allocation13], 256
        $region60: #{tpu_custom_call.1} parent=43 // pred_fallthru
          _
        %s336 = sand.u32 %s56, 1
        %s337 = scalar_lea.sflag [#allocation7], %s336
        %s338 = sand.u32 %s56, 1
        %s339 = smul.addr %s338, 8
        %s340 = scalar_lea.vmem [#allocation6], %s339
        %p341 = pneg %p69
        %p342 = pneg %p66
        %s343 = sand.u32 %s27, 1
        %s344 = scalar_lea.sflag [#allocation10], %s343
        %s345 = sand.u32 %s84, 1
        %s346 = smul.addr %s345, 8
        %s347 = scalar_lea.vmem [#allocation9], %s346
        %p348 = pneg %p97
        %p349 = pneg %p94
        %p350 = pneg %p118
        %p351 = pneg %p115
        %p352 = pneg %p139
        %p353 = pneg %p136
        %p354 = pneg %p160
        %p355 = pneg %p157
        %p356 = pneg %p181
        %p357 = pneg %p178
        %p358 = pneg %p209
        %p359 = pneg %p206
        %s360 = sand.u32 %s196, 1
        %s361 = scalar_lea.sflag [#allocation8], %s360
        %s362 = sand.u32 %s196, 1
        %s363 = smul.addr %s362, 8
        %s364 = scalar_lea.vmem [#allocation14], %s363
        %s365 = smul.u32 2, %s34
        %p367 = scmp.eq.s32.totalorder %s34, 0
        // Predicated region
        $region61: #{tpu_custom_call.1} parent=43 // pred_check
          %p368 = pneg %p367
        $region62: #{tpu_custom_call.1} parent=43 // pred_check_branch
          %370 = sbr.rel (%p368) target = $region64
        $region63: #{tpu_custom_call.1} parent=43 // pred_region
          %v371 = vld [vmem:[%s314] sm:$0xff]
          %v372 = vmul.f32 %v371, %v371
          %vm373 = vcmask 261120
          %v374 = vsel %vm373, %v372, 0.0
          %375 = vadd.xlane.f32.xlu0 %v374
          %v376 = vpop.xlane.xlu0 %375
          %v377 = vrcp.pop 32.0
          %v378 = vmul.f32 %v376, %v377
          %v379 = vadd.f32 %v378, 1e-06
          %v380 = vrsqrt.pop %v379
          %v381 = vmul.f32 %v371, %v380
          %v382 = vld [vmem:[%s2] sm:$0x1]
          %v384 = vlaneseq
          %v385 = vshrl.u32 %v384, 7
          %v386 = vsub.s32 0, %v385
          %v387 = vrot.slane %v382, %v386
          %v389 = vmul.f32 %v381, %v387
          %v390 = vpack.c.bf16 %v389, %v389
          %v391 = vld [vmem:[#allocation11] sm:$0xf]
          %v392 = vld [vmem:[#allocation11 + $0x4] sm:$0xf]
          %v393 = vld [vmem:[#allocation11 + $0x8] sm:$0xf]
          %v394 = vld [vmem:[#allocation11 + $0xc] sm:$0xf]
          %v399 = vunpack.c.l.b16 %v391
          %v400 = vunpack.c.l.b16 %v392
          %v401 = vunpack.c.l.b16 %v393
          %v402 = vunpack.c.l.b16 %v394
          %v403 = vpack.c.b16 %v400, %v399
          %v404 = vpack.c.b16 %v402, %v401
          %v408 = vsel %vm373, %v390, 0
          %410 = vmatprep.subr.bf16.mxu0 0
          %411 = vmatpush1.bf16.msra.mxu0 %v403
          %412 = vmatprep.subr.bf16.mxu0 0
          %413 = vmatpush1.bf16.msra.mxu0 %v404
          %414 = vmatprep.subr.bf16.mxu0 0
          %415 = vmatpush1.bf16.msra.mxu0 0
          %416 = vmatprep.subr.bf16.mxu0 0
          %417 = vmatpush1.bf16.msra.mxu0 0
          %418 = vmatprep.subr.bf16.mxu0 0
          %419 = vmatpush1.bf16.msra.mxu0 0
          %420 = vmatprep.subr.bf16.mxu0 0
          %421 = vmatpush1.bf16.msra.mxu0 0
          %422 = vmatprep.subr.bf16.mxu0 0
          %423 = vmatpush1.bf16.msra.mxu0 0
          %424 = vmatprep.subr.bf16.mxu0 0
          %425 = vmatpush1.bf16.msra.mxu0 0
          %426 = vmatprep.subr.bf16.mxu0 0
          %427 = vmatpush1.bf16.msra.mxu0 0
          %428 = vmatprep.subr.bf16.mxu0 0
          %429 = vmatpush1.bf16.msra.mxu0 0
          %430 = vmatprep.subr.bf16.mxu0 0
          %431 = vmatpush1.bf16.msra.mxu0 0
          %432 = vmatprep.subr.bf16.mxu0 0
          %433 = vmatpush1.bf16.msra.mxu0 0
          %434 = vmatprep.subr.bf16.mxu0 0
          %435 = vmatpush1.bf16.msra.mxu0 0
          %436 = vmatprep.subr.bf16.mxu0 0
          %437 = vmatpush1.bf16.msra.mxu0 0
          %438 = vmatprep.subr.bf16.mxu0 0
          %439 = vmatpush1.bf16.msra.mxu0 0
          %440 = vmatprep.subr.bf16.mxu0 0
          %441 = vmatpush1.bf16.msra.mxu0 0
          %442 = vmatprep.mubr.bf16.mxu0 0
          %443 = vmatmul.mubr.bf16.gmra.mrb[0].mxu0 %v408
          %v444 = vpop.f32.mrb[0].mxu0
          %v445 = vadd.f32 0.0, %v444
          %v446 = vpop.f32.mrb[0].mxu0
          %v447 = vpop.f32.mrb[0].mxu0
          %v448 = vpop.f32.mrb[0].mxu0
          %449 = vdwg.mxu0
          %v450 = vpack.c.bf16 %v445, %v445
          %vm451 = vcmask 257024
          %452 = vst.msk [vmem:[#allocation2] sm:$0xf] %vm451, %v450
          %vm453 = vcmask 31744
          %454 = vst.msk [vmem:[#allocation3] sm:$0xff] %vm453, -inf
          %455 = vst.msk [vmem:[#allocation4] sm:$0xff] %vm453, 0.0
          %456 = vst.msk [vmem:[#allocation5] sm:$0xff] %vm373, 0.0
        $region64: #{tpu_custom_call.1} parent=43 // pred_fallthru
          _
        %v457 = vld [vmem:[%s323] sm:$0xf]
        %v458 = vld [vmem:[%s323 + $0x4] sm:$0xf]
        %v459 = vld [vmem:[#allocation12] sm:$0xf]
        %v460 = vld [vmem:[#allocation12 + $0x4] sm:$0xf]
        %v461 = vld [vmem:[#allocation12 + $0x8] sm:$0xf]
        %v462 = vld [vmem:[#allocation12 + $0xc] sm:$0xf]
        %v465 = vunpack.c.l.b16 %v457
        %v466 = vunpack.c.l.b16 %v458
        %v467 = vpack.c.b16 %v466, %v465
        %v472 = vunpack.c.l.b16 %v459
        %v473 = vunpack.c.l.b16 %v460
        %v474 = vunpack.c.l.b16 %v461
        %v475 = vunpack.c.l.b16 %v462
        %v476 = vpack.c.b16 %v473, %v472
        %v477 = vpack.c.b16 %v475, %v474
        %vm480 = vcmask 261120
        %v482 = vsel %vm480, %v467, 0
        %484 = vmatprep.subr.bf16.mxu0 0
        %485 = vmatpush1.bf16.msra.mxu0 %v476
        %486 = vmatprep.subr.bf16.mxu0 0
        %487 = vmatpush1.bf16.msra.mxu0 %v477
        %488 = vmatprep.subr.bf16.mxu0 0
        %489 = vmatpush1.bf16.msra.mxu0 0
        %490 = vmatprep.subr.bf16.mxu0 0
        %491 = vmatpush1.bf16.msra.mxu0 0
        %492 = vmatprep.subr.bf16.mxu0 0
        %493 = vmatpush1.bf16.msra.mxu0 0
        %494 = vmatprep.subr.bf16.mxu0 0
        %495 = vmatpush1.bf16.msra.mxu0 0
        %496 = vmatprep.subr.bf16.mxu0 0
        %497 = vmatpush1.bf16.msra.mxu0 0
        %498 = vmatprep.subr.bf16.mxu0 0
        %499 = vmatpush1.bf16.msra.mxu0 0
        %500 = vmatprep.subr.bf16.mxu0 0
        %501 = vmatpush1.bf16.msra.mxu0 0
        %502 = vmatprep.subr.bf16.mxu0 0
        %503 = vmatpush1.bf16.msra.mxu0 0
        %504 = vmatprep.subr.bf16.mxu0 0
        %505 = vmatpush1.bf16.msra.mxu0 0
        %506 = vmatprep.subr.bf16.mxu0 0
        %507 = vmatpush1.bf16.msra.mxu0 0
        %508 = vmatprep.subr.bf16.mxu0 0
        %509 = vmatpush1.bf16.msra.mxu0 0
        %510 = vmatprep.subr.bf16.mxu0 0
        %511 = vmatpush1.bf16.msra.mxu0 0
        %512 = vmatprep.subr.bf16.mxu0 0
        %513 = vmatpush1.bf16.msra.mxu0 0
        %514 = vmatprep.subr.bf16.mxu0 0
        %515 = vmatpush1.bf16.msra.mxu0 0
        %516 = vmatprep.mubr.bf16.mxu0 0
        %517 = vmatmul.mubr.bf16.gmra.mrb[0].mxu0 %v482
        %v518 = vpop.f32.mrb[0].mxu0
        %v519 = vadd.f32 0.0, %v518
        %v520 = vpop.f32.mrb[0].mxu0
        %v521 = vpop.f32.mrb[0].mxu0
        %v522 = vadd.f32 0.0, %v521
        %v523 = vpop.f32.mrb[0].mxu0
        %524 = vdwg.mxu0
        %v525 = vld [vmem:[#allocation2] sm:$0xf]
        %v526 = vpack.c.bf16 %v522, %v519
        %vm527 = vcmask 64512
        %v529 = vsel %vm527, %v525, 0
        %v532 = vsel %vm527, %v526, 0
        %534 = vmatprep.subr.bf16.mxu0 0
        %535 = vmatpush1.bf16.xpose.msra.mxu0 %v532
        %536 = vmatprep.subr.bf16.mxu0 0
        %537 = vmatpush1.bf16.xpose.msra.mxu0 0
        %538 = vmatprep.subr.bf16.mxu0 0
        %539 = vmatpush1.bf16.xpose.msra.mxu0 0
        %540 = vmatprep.subr.bf16.mxu0 0
        %541 = vmatpush1.bf16.xpose.msra.mxu0 0
        %542 = vmatprep.subr.bf16.mxu0 0
        %543 = vmatpush1.bf16.xpose.msra.mxu0 0
        %544 = vmatprep.subr.bf16.mxu0 0
        %545 = vmatpush1.bf16.xpose.msra.mxu0 0
        %546 = vmatprep.subr.bf16.mxu0 0
        %547 = vmatpush1.bf16.xpose.msra.mxu0 0
        %548 = vmatprep.subr.bf16.mxu0 0
        %549 = vmatpush1.bf16.xpose.msra.mxu0 0
        %550 = vmatprep.subr.bf16.mxu0 0
        %551 = vmatpush1.bf16.xpose.msra.mxu0 0
        %552 = vmatprep.subr.bf16.mxu0 0
        %553 = vmatpush1.bf16.xpose.msra.mxu0 0
        %554 = vmatprep.subr.bf16.mxu0 0
        %555 = vmatpush1.bf16.xpose.msra.mxu0 0
        %556 = vmatprep.subr.bf16.mxu0 0
        %557 = vmatpush1.bf16.xpose.msra.mxu0 0
        %558 = vmatprep.subr.bf16.mxu0 0
        %559 = vmatpush1.bf16.xpose.msra.mxu0 0
        %560 = vmatprep.subr.bf16.mxu0 0
        %561 = vmatpush1.bf16.xpose.msra.mxu0 0
        %562 = vmatprep.subr.bf16.mxu0 0
        %563 = vmatpush1.bf16.xpose.msra.mxu0 0
        %564 = vmatprep.subr.bf16.mxu0 0
        %565 = vmatpush1.bf16.xpose.msra.mxu0 0
        %566 = vmatprep.mubr.bf16.mxu0 0
        %567 = vmatmul.mubr.bf16.gmra.mrb[0].mxu0 %v529
        %v568 = vpop.f32.mrb[0].mxu0
        %v569 = vadd.f32 0.0, %v568
        %v570 = vpop.f32.mrb[0].mxu0
        %v571 = vpop.f32.mrb[0].mxu0
        %v572 = vpop.f32.mrb[0].mxu0
        %573 = vdwg.mxu0
        %v574 = vld [vmem:[#allocation3] sm:$0xff]
        %vm575 = vcmask 130048
        %v576 = vsel %vm575, %v569, -inf
        %577 = vmax.xlane.f32.xlu0 %v576
        %v578 = vpop.xlane.xlu0 %577
        %v579 = vmax.f32 %v574, %v578
        %v580 = vsub.f32 %v574, %v579
        %v581 = vmul.f32 %v580, 1.442695
        %v582 = vpow.pop %v581
        %584 = vset.pattern.permute.xlu0 0
        %585 = vperm.xlu0 %584, %v579
        %v586 = vpop.permute.xlu0 %585
        %v588 = vsub.f32 %v569, %v586
        %v589 = vmul.f32 %v588, 1.442695
        %v590 = vpow.pop %v589
        %v591 = vld [vmem:[#allocation4] sm:$0xff]
        %v592 = vmul.f32 %v582, %v591
        %v593 = vsel %vm575, %v590, 0.0
        %594 = vadd.xlane.f32.xlu0 %v593
        %v595 = vpop.xlane.xlu0 %594
        %v596 = vadd.f32 %v592, %v595
        %vm597 = vcmask 7168
        %598 = vst.msk [vmem:[#allocation4] sm:$0xff] %vm597, %v596
        %v599 = vpack.c.bf16 %v590, %v590
        %601 = vrot.lane.b32.xlu0 %v526, 96
        %v602 = vpop.permute.xlu0 %601
        %v605 = vsel %vm575, %v599, 0
        %607 = vmatprep.subr.bf16.mxu0 0
        %608 = vmatpush1.bf16.msra.mxu0 %v602
        %609 = vmatprep.subr.bf16.mxu0 0
        %610 = vmatpush1.bf16.msra.mxu0 0
        %611 = vmatprep.subr.bf16.mxu0 0
        %612 = vmatpush1.bf16.msra.mxu0 0
        %613 = vmatprep.subr.bf16.mxu0 0
        %614 = vmatpush1.bf16.msra.mxu0 0
        %615 = vmatprep.subr.bf16.mxu0 0
        %616 = vmatpush1.bf16.msra.mxu0 0
        %617 = vmatprep.subr.bf16.mxu0 0
        %618 = vmatpush1.bf16.msra.mxu0 0
        %619 = vmatprep.subr.bf16.mxu0 0
        %620 = vmatpush1.bf16.msra.mxu0 0
        %621 = vmatprep.subr.bf16.mxu0 0
        %622 = vmatpush1.bf16.msra.mxu0 0
        %623 = vmatprep.subr.bf16.mxu0 0
        %624 = vmatpush1.bf16.msra.mxu0 0
        %625 = vmatprep.subr.bf16.mxu0 0
        %626 = vmatpush1.bf16.msra.mxu0 0
        %627 = vmatprep.subr.bf16.mxu0 0
        %628 = vmatpush1.bf16.msra.mxu0 0
        %629 = vmatprep.subr.bf16.mxu0 0
        %630 = vmatpush1.bf16.msra.mxu0 0
        %631 = vmatprep.subr.bf16.mxu0 0
        %632 = vmatpush1.bf16.msra.mxu0 0
        %633 = vmatprep.subr.bf16.mxu0 0
        %634 = vmatpush1.bf16.msra.mxu0 0
        %635 = vmatprep.subr.bf16.mxu0 0
        %636 = vmatpush1.bf16.msra.mxu0 0
        %637 = vmatprep.subr.bf16.mxu0 0
        %638 = vmatpush1.bf16.msra.mxu0 0
        %639 = vmatprep.mubr.bf16.mxu0 0
        %640 = vmatmul.mubr.bf16.gmra.mrb[0].mxu0 %v605
        %v641 = vpop.f32.mrb[0].mxu0
        %v642 = vadd.f32 0.0, %v641
        %v643 = vpop.f32.mrb[0].mxu0
        %v644 = vpop.f32.mrb[0].mxu0
        %v645 = vpop.f32.mrb[0].mxu0
        %646 = vdwg.mxu0
        %v647 = vld [vmem:[#allocation5] sm:$0xff]
        %649 = vset.pattern.permute.xlu0 0
        %650 = vperm.xlu0 %649, %v582
        %v651 = vpop.permute.xlu0 %650
        %v653 = vmul.f32 %v651, %v647
        %v654 = vadd.f32 %v653, %v642
        %655 = vst.msk [vmem:[#allocation5] sm:$0xff] %vm527, %v654
        %656 = vst.msk [vmem:[#allocation3] sm:$0xff] %vm597, %v579
        %v658 = vunpack.c.l.b16 %v525
        %v659 = vpack.c.b16 %v658, %v658
        %660 = vrot.lane.b32.xlu0 %v659, 120
        %v661 = vpop.permute.xlu0 %660
        %662 = vrot.lane.b32.xlu0 %v526, 120
        %v663 = vpop.permute.xlu0 %662
        %v665 = vsel %vm527, %v661, 0
        %v668 = vsel %vm527, %v663, 0
        %670 = vmatprep.subr.bf16.mxu0 0
        %671 = vmatpush1.bf16.xpose.msra.mxu0 %v668
        %672 = vmatprep.subr.bf16.mxu0 0
        %673 = vmatpush1.bf16.xpose.msra.mxu0 0
        %674 = vmatprep.subr.bf16.mxu0 0
        %675 = vmatpush1.bf16.xpose.msra.mxu0 0
        %676 = vmatprep.subr.bf16.mxu0 0
        %677 = vmatpush1.bf16.xpose.msra.mxu0 0
        %678 = vmatprep.subr.bf16.mxu0 0
        %679 = vmatpush1.bf16.xpose.msra.mxu0 0
        %680 = vmatprep.subr.bf16.mxu0 0
        %681 = vmatpush1.bf16.xpose.msra.mxu0 0
        %682 = vmatprep.subr.bf16.mxu0 0
        %683 = vmatpush1.bf16.xpose.msra.mxu0 0
        %684 = vmatprep.subr.bf16.mxu0 0
        %685 = vmatpush1.bf16.xpose.msra.mxu0 0
        %686 = vmatprep.subr.bf16.mxu0 0
        %687 = vmatpush1.bf16.xpose.msra.mxu0 0
        %688 = vmatprep.subr.bf16.mxu0 0
        %689 = vmatpush1.bf16.xpose.msra.mxu0 0
        %690 = vmatprep.subr.bf16.mxu0 0
        %691 = vmatpush1.bf16.xpose.msra.mxu0 0
        %692 = vmatprep.subr.bf16.mxu0 0
        %693 = vmatpush1.bf16.xpose.msra.mxu0 0
        %694 = vmatprep.subr.bf16.mxu0 0
        %695 = vmatpush1.bf16.xpose.msra.mxu0 0
        %696 = vmatprep.subr.bf16.mxu0 0
        %697 = vmatpush1.bf16.xpose.msra.mxu0 0
        %698 = vmatprep.subr.bf16.mxu0 0
        %699 = vmatpush1.bf16.xpose.msra.mxu0 0
        %700 = vmatprep.subr.bf16.mxu0 0
        %701 = vmatpush1.bf16.xpose.msra.mxu0 0
        %702 = vmatprep.mubr.bf16.mxu0 0
        %703 = vmatmul.mubr.bf16.gmra.mrb[0].mxu0 %v665
        %v704 = vpop.f32.mrb[0].mxu0
        %v705 = vadd.f32 0.0, %v704
        %v706 = vpop.f32.mrb[0].mxu0
        %v707 = vpop.f32.mrb[0].mxu0
        %v708 = vpop.f32.mrb[0].mxu0
        %709 = vdwg.mxu0
        %v710 = vld [vmem:[#allocation3] sm:$0xff]
        %v711 = vsel %vm575, %v705, -inf
        %712 = vmax.xlane.f32.xlu0 %v711
        %v713 = vpop.xlane.xlu0 %712
        %v714 = vmax.f32 %v710, %v713
        %v715 = vsub.f32 %v710, %v714
        %v716 = vmul.f32 %v715, 1.442695
        %v717 = vpow.pop %v716
        %719 = vset.pattern.permute.xlu0 1
        %720 = vperm.xlu0 %719, %v714
        %v721 = vpop.permute.xlu0 %720
        %v723 = vsub.f32 %v705, %v721
        %v724 = vmul.f32 %v723, 1.442695
        %v725 = vpow.pop %v724
        %v726 = vld [vmem:[#allocation4] sm:$0xff]
        %v727 = vmul.f32 %v717, %v726
        %v728 = vsel %vm575, %v725, 0.0
        %729 = vadd.xlane.f32.xlu0 %v728
        %v730 = vpop.xlane.xlu0 %729
        %v731 = vadd.f32 %v727, %v730
        %vm732 = vcmask 15368
        %733 = vst.msk [vmem:[#allocation4] sm:$0xff] %vm732, %v731
        %v734 = vpack.c.bf16 %v725, %v725
        %735 = vrot.lane.b32.xlu0 %v526, 88
        %v736 = vpop.permute.xlu0 %735
        %v739 = vsel %vm575, %v734, 0
        %741 = vmatprep.subr.bf16.mxu0 0
        %742 = vmatpush1.bf16.msra.mxu0 %v736
        %743 = vmatprep.subr.bf16.mxu0 0
        %744 = vmatpush1.bf16.msra.mxu0 0
        %745 = vmatprep.subr.bf16.mxu0 0
        %746 = vmatpush1.bf16.msra.mxu0 0
        %747 = vmatprep.subr.bf16.mxu0 0
        %748 = vmatpush1.bf16.msra.mxu0 0
        %749 = vmatprep.subr.bf16.mxu0 0
        %750 = vmatpush1.bf16.msra.mxu0 0
        %751 = vmatprep.subr.bf16.mxu0 0
        %752 = vmatpush1.bf16.msra.mxu0 0
        %753 = vmatprep.subr.bf16.mxu0 0
        %754 = vmatpush1.bf16.msra.mxu0 0
        %755 = vmatprep.subr.bf16.mxu0 0
        %756 = vmatpush1.bf16.msra.mxu0 0
        %757 = vmatprep.subr.bf16.mxu0 0
        %758 = vmatpush1.bf16.msra.mxu0 0
        %759 = vmatprep.subr.bf16.mxu0 0
        %760 = vmatpush1.bf16.msra.mxu0 0
        %761 = vmatprep.subr.bf16.mxu0 0
        %762 = vmatpush1.bf16.msra.mxu0 0
        %763 = vmatprep.subr.bf16.mxu0 0
        %764 = vmatpush1.bf16.msra.mxu0 0
        %765 = vmatprep.subr.bf16.mxu0 0
        %766 = vmatpush1.bf16.msra.mxu0 0
        %767 = vmatprep.subr.bf16.mxu0 0
        %768 = vmatpush1.bf16.msra.mxu0 0
        %769 = vmatprep.subr.bf16.mxu0 0
        %770 = vmatpush1.bf16.msra.mxu0 0
        %771 = vmatprep.subr.bf16.mxu0 0
        %772 = vmatpush1.bf16.msra.mxu0 0
        %773 = vmatprep.mubr.bf16.mxu0 0
        %774 = vmatmul.mubr.bf16.gmra.mrb[0].mxu0 %v739
        %v775 = vpop.f32.mrb[0].mxu0
        %v776 = vadd.f32 0.0, %v775
        %v777 = vpop.f32.mrb[0].mxu0
        %v778 = vpop.f32.mrb[0].mxu0
        %v779 = vpop.f32.mrb[0].mxu0
        %780 = vdwg.mxu0
        %v781 = vld [vmem:[#allocation5] sm:$0xff]
        %783 = vset.pattern.permute.xlu0 1
        %784 = vperm.xlu0 %783, %v717
        %v785 = vpop.permute.xlu0 %784
        %v787 = vmul.f32 %v785, %v781
        %789 = vrot.lane.b32.xlu0 %v776, 8
        %v790 = vpop.permute.xlu0 %789
        %v792 = vadd.f32 %v787, %v790
        %vm793 = vcmask 130112
        %794 = vst.msk [vmem:[#allocation5] sm:$0xff] %vm793, %v792
        %795 = vst.msk [vmem:[#allocation3] sm:$0xff] %vm732, %v714
        %796 = vrot.lane.b32.xlu0 %v659, 112
        %v797 = vpop.permute.xlu0 %796
        %798 = vrot.lane.b32.xlu0 %v526, 112
        %v799 = vpop.permute.xlu0 %798
        %v801 = vsel %vm527, %v797, 0
        %v804 = vsel %vm527, %v799, 0
        %806 = vmatprep.subr.bf16.mxu0 0
        %807 = vmatpush1.bf16.xpose.msra.mxu0 %v804
        %808 = vmatprep.subr.bf16.mxu0 0
        %809 = vmatpush1.bf16.xpose.msra.mxu0 0
        %810 = vmatprep.subr.bf16.mxu0 0
        %811 = vmatpush1.bf16.xpose.msra.mxu0 0
        %812 = vmatprep.subr.bf16.mxu0 0
        %813 = vmatpush1.bf16.xpose.msra.mxu0 0
        %814 = vmatprep.subr.bf16.mxu0 0
        %815 = vmatpush1.bf16.xpose.msra.mxu0 0
        %816 = vmatprep.subr.bf16.mxu0 0
        %817 = vmatpush1.bf16.xpose.msra.mxu0 0
        %818 = vmatprep.subr.bf16.mxu0 0
        %819 = vmatpush1.bf16.xpose.msra.mxu0 0
        %820 = vmatprep.subr.bf16.mxu0 0
        %821 = vmatpush1.bf16.xpose.msra.mxu0 0
        %822 = vmatprep.subr.bf16.mxu0 0
        %823 = vmatpush1.bf16.xpose.msra.mxu0 0
        %824 = vmatprep.subr.bf16.mxu0 0
        %825 = vmatpush1.bf16.xpose.msra.mxu0 0
        %826 = vmatprep.subr.bf16.mxu0 0
        %827 = vmatpush1.bf16.xpose.msra.mxu0 0
        %828 = vmatprep.subr.bf16.mxu0 0
        %829 = vmatpush1.bf16.xpose.msra.mxu0 0
        %830 = vmatprep.subr.bf16.mxu0 0
        %831 = vmatpush1.bf16.xpose.msra.mxu0 0
        %832 = vmatprep.subr.bf16.mxu0 0
        %833 = vmatpush1.bf16.xpose.msra.mxu0 0
        %834 = vmatprep.subr.bf16.mxu0 0
        %835 = vmatpush1.bf16.xpose.msra.mxu0 0
        %836 = vmatprep.subr.bf16.mxu0 0
        %837 = vmatpush1.bf16.xpose.msra.mxu0 0
        %838 = vmatprep.mubr.bf16.mxu0 0
        %839 = vmatmul.mubr.bf16.gmra.mrb[0].mxu0 %v801
        %v840 = vpop.f32.mrb[0].mxu0
        %v841 = vadd.f32 0.0, %v840
        %v842 = vpop.f32.mrb[0].mxu0
        %v843 = vpop.f32.mrb[0].mxu0
        %v844 = vpop.f32.mrb[0].mxu0
        %845 = vdwg.mxu0
        %v846 = vld [vmem:[#allocation3] sm:$0xff]
        %v847 = vsel %vm575, %v841, -inf
        %848 = vmax.xlane.f32.xlu0 %v847
        %v849 = vpop.xlane.xlu0 %848
        %v850 = vmax.f32 %v846, %v849
        %v851 = vsub.f32 %v846, %v850
        %v852 = vmul.f32 %v851, 1.442695
        %v853 = vpow.pop %v852
        %855 = vset.pattern.permute.xlu0 2
        %856 = vperm.xlu0 %855, %v850
        %v857 = vpop.permute.xlu0 %856
        %v859 = vsub.f32 %v841, %v857
        %v860 = vmul.f32 %v859, 1.442695
        %v861 = vpow.pop %v860
        %v862 = vld [vmem:[#allocation4] sm:$0xff]
        %v863 = vmul.f32 %v853, %v862
        %v864 = vsel %vm575, %v861, 0.0
        %865 = vadd.xlane.f32.xlu0 %v864
        %v866 = vpop.xlane.xlu0 %865
        %v867 = vadd.f32 %v863, %v866
        %vm868 = vcmask 23568
        %869 = vst.msk [vmem:[#allocation4] sm:$0xff] %vm868, %v867
        %v870 = vpack.c.bf16 %v861, %v861
        %871 = vrot.lane.b32.xlu0 %v526, 80
        %v872 = vpop.permute.xlu0 %871
        %v875 = vsel %vm575, %v870, 0
        %877 = vmatprep.subr.bf16.mxu0 0
        %878 = vmatpush1.bf16.msra.mxu0 %v872
        %879 = vmatprep.subr.bf16.mxu0 0
        %880 = vmatpush1.bf16.msra.mxu0 0
        %881 = vmatprep.subr.bf16.mxu0 0
        %882 = vmatpush1.bf16.msra.mxu0 0
        %883 = vmatprep.subr.bf16.mxu0 0
        %884 = vmatpush1.bf16.msra.mxu0 0
        %885 = vmatprep.subr.bf16.mxu0 0
        %886 = vmatpush1.bf16.msra.mxu0 0
        %887 = vmatprep.subr.bf16.mxu0 0
        %888 = vmatpush1.bf16.msra.mxu0 0
        %889 = vmatprep.subr.bf16.mxu0 0
        %890 = vmatpush1.bf16.msra.mxu0 0
        %891 = vmatprep.subr.bf16.mxu0 0
        %892 = vmatpush1.bf16.msra.mxu0 0
        %893 = vmatprep.subr.bf16.mxu0 0
        %894 = vmatpush1.bf16.msra.mxu0 0
        %895 = vmatprep.subr.bf16.mxu0 0
        %896 = vmatpush1.bf16.msra.mxu0 0
        %897 = vmatprep.subr.bf16.mxu0 0
        %898 = vmatpush1.bf16.msra.mxu0 0
        %899 = vmatprep.subr.bf16.mxu0 0
        %900 = vmatpush1.bf16.msra.mxu0 0
        %901 = vmatprep.subr.bf16.mxu0 0
        %902 = vmatpush1.bf16.msra.mxu0 0
        %903 = vmatprep.subr.bf16.mxu0 0
        %904 = vmatpush1.bf16.msra.mxu0 0
        %905 = vmatprep.subr.bf16.mxu0 0
        %906 = vmatpush1.bf16.msra.mxu0 0
        %907 = vmatprep.subr.bf16.mxu0 0
        %908 = vmatpush1.bf16.msra.mxu0 0
        %909 = vmatprep.mubr.bf16.mxu0 0
        %910 = vmatmul.mubr.bf16.gmra.mrb[0].mxu0 %v875
        %v911 = vpop.f32.mrb[0].mxu0
        %v912 = vadd.f32 0.0, %v911
        %v913 = vpop.f32.mrb[0].mxu0
        %v914 = vpop.f32.mrb[0].mxu0
        %v915 = vpop.f32.mrb[0].mxu0
        %916 = vdwg.mxu0
        %v917 = vld [vmem:[#allocation5] sm:$0xff]
        %919 = vset.pattern.permute.xlu0 2
        %920 = vperm.xlu0 %919, %v853
        %v921 = vpop.permute.xlu0 %920
        %v923 = vmul.f32 %v921, %v917
        %925 = vrot.lane.b32.xlu0 %v912, 16
        %v926 = vpop.permute.xlu0 %925
        %v928 = vadd.f32 %v923, %v926
        %vm929 = vcmask 195712
        %930 = vst.msk [vmem:[#allocation5] sm:$0xff] %vm929, %v928
        %931 = vst.msk [vmem:[#allocation3] sm:$0xff] %vm868, %v850
        %932 = vrot.lane.b32.xlu0 %v659, 104
        %v933 = vpop.permute.xlu0 %932
        %934 = vrot.lane.b32.xlu0 %v526, 104
        %v935 = vpop.permute.xlu0 %934
        %v937 = vsel %vm527, %v933, 0
        %v940 = vsel %vm527, %v935, 0
        %942 = vmatprep.subr.bf16.mxu0 0
        %943 = vmatpush1.bf16.xpose.msra.mxu0 %v940
        %944 = vmatprep.subr.bf16.mxu0 0
        %945 = vmatpush1.bf16.xpose.msra.mxu0 0
        %946 = vmatprep.subr.bf16.mxu0 0
        %947 = vmatpush1.bf16.xpose.msra.mxu0 0
        %948 = vmatprep.subr.bf16.mxu0 0
        %949 = vmatpush1.bf16.xpose.msra.mxu0 0
        %950 = vmatprep.subr.bf16.mxu0 0
        %951 = vmatpush1.bf16.xpose.msra.mxu0 0
        %952 = vmatprep.subr.bf16.mxu0 0
        %953 = vmatpush1.bf16.xpose.msra.mxu0 0
        %954 = vmatprep.subr.bf16.mxu0 0
        %955 = vmatpush1.bf16.xpose.msra.mxu0 0
        %956 = vmatprep.subr.bf16.mxu0 0
        %957 = vmatpush1.bf16.xpose.msra.mxu0 0
        %958 = vmatprep.subr.bf16.mxu0 0
        %959 = vmatpush1.bf16.xpose.msra.mxu0 0
        %960 = vmatprep.subr.bf16.mxu0 0
        %961 = vmatpush1.bf16.xpose.msra.mxu0 0
        %962 = vmatprep.subr.bf16.mxu0 0
        %963 = vmatpush1.bf16.xpose.msra.mxu0 0
        %964 = vmatprep.subr.bf16.mxu0 0
        %965 = vmatpush1.bf16.xpose.msra.mxu0 0
        %966 = vmatprep.subr.bf16.mxu0 0
        %967 = vmatpush1.bf16.xpose.msra.mxu0 0
        %968 = vmatprep.subr.bf16.mxu0 0
        %969 = vmatpush1.bf16.xpose.msra.mxu0 0
        %970 = vmatprep.subr.bf16.mxu0 0
        %971 = vmatpush1.bf16.xpose.msra.mxu0 0
        %972 = vmatprep.subr.bf16.mxu0 0
        %973 = vmatpush1.bf16.xpose.msra.mxu0 0
        %974 = vmatprep.mubr.bf16.mxu0 0
        %975 = vmatmul.mubr.bf16.gmra.mrb[0].mxu0 %v937
        %v976 = vpop.f32.mrb[0].mxu0
        %v977 = vadd.f32 0.0, %v976
        %v978 = vpop.f32.mrb[0].mxu0
        %v979 = vpop.f32.mrb[0].mxu0
        %v980 = vpop.f32.mrb[0].mxu0
        %981 = vdwg.mxu0
        %v982 = vld [vmem:[#allocation3] sm:$0xff]
        %v983 = vsel %vm575, %v977, -inf
        %984 = vmax.xlane.f32.xlu0 %v983
        %v985 = vpop.xlane.xlu0 %984
        %v986 = vmax.f32 %v982, %v985
        %v987 = vsub.f32 %v982, %v986
        %v988 = vmul.f32 %v987, 1.442695
        %v989 = vpow.pop %v988
        %991 = vset.pattern.permute.xlu0 3
        %992 = vperm.xlu0 %991, %v986
        %v993 = vpop.permute.xlu0 %992
        %v995 = vsub.f32 %v977, %v993
        %v996 = vmul.f32 %v995, 1.442695
        %v997 = vpow.pop %v996
        %v998 = vld [vmem:[#allocation4] sm:$0xff]
        %v999 = vmul.f32 %v989, %v998
        %v1000 = vsel %vm575, %v997, 0.0
        %1001 = vadd.xlane.f32.xlu0 %v1000
        %v1002 = vpop.xlane.xlu0 %1001
        %v1003 = vadd.f32 %v999, %v1002
        %vm1004 = vcmask 31768
        %1005 = vst.msk [vmem:[#allocation4] sm:$0xff] %vm1004, %v1003
        %v1006 = vpack.c.bf16 %v997, %v997
        %1007 = vrot.lane.b32.xlu0 %v526, 72
        %v1008 = vpop.permute.xlu0 %1007
        %v1011 = vsel %vm575, %v1006, 0
        %1013 = vmatprep.subr.bf16.mxu0 0
        %1014 = vmatpush1.bf16.msra.mxu0 %v1008
        %1015 = vmatprep.subr.bf16.mxu0 0
        %1016 = vmatpush1.bf16.msra.mxu0 0
        %1017 = vmatprep.subr.bf16.mxu0 0
        %1018 = vmatpush1.bf16.msra.mxu0 0
        %1019 = vmatprep.subr.bf16.mxu0 0
        %1020 = vmatpush1.bf16.msra.mxu0 0
        %1021 = vmatprep.subr.bf16.mxu0 0
        %1022 = vmatpush1.bf16.msra.mxu0 0
        %1023 = vmatprep.subr.bf16.mxu0 0
        %1024 = vmatpush1.bf16.msra.mxu0 0
        %1025 = vmatprep.subr.bf16.mxu0 0
        %1026 = vmatpush1.bf16.msra.mxu0 0
        %1027 = vmatprep.subr.bf16.mxu0 0
        %1028 = vmatpush1.bf16.msra.mxu0 0
        %1029 = vmatprep.subr.bf16.mxu0 0
        %1030 = vmatpush1.bf16.msra.mxu0 0
        %1031 = vmatprep.subr.bf16.mxu0 0
        %1032 = vmatpush1.bf16.msra.mxu0 0
        %1033 = vmatprep.subr.bf16.mxu0 0
        %1034 = vmatpush1.bf16.msra.mxu0 0
        %1035 = vmatprep.subr.bf16.mxu0 0
        %1036 = vmatpush1.bf16.msra.mxu0 0
        %1037 = vmatprep.subr.bf16.mxu0 0
        %1038 = vmatpush1.bf16.msra.mxu0 0
        %1039 = vmatprep.subr.bf16.mxu0 0
        %1040 = vmatpush1.bf16.msra.mxu0 0
        %1041 = vmatprep.subr.bf16.mxu0 0
        %1042 = vmatpush1.bf16.msra.mxu0 0
        %1043 = vmatprep.subr.bf16.mxu0 0
        %1044 = vmatpush1.bf16.msra.mxu0 0
        %1045 = vmatprep.mubr.bf16.mxu0 0
        %1046 = vmatmul.mubr.bf16.gmra.mrb[0].mxu0 %v1011
        %v1047 = vpop.f32.mrb[0].mxu0
        %v1048 = vadd.f32 0.0, %v1047
        %v1049 = vpop.f32.mrb[0].mxu0
        %v1050 = vpop.f32.mrb[0].mxu0
        %v1051 = vpop.f32.mrb[0].mxu0
        %1052 = vdwg.mxu0
        %v1053 = vld [vmem:[#allocation5] sm:$0xff]
        %1055 = vset.pattern.permute.xlu0 3
        %1056 = vperm.xlu0 %1055, %v989
        %v1057 = vpop.permute.xlu0 %1056
        %v1059 = vmul.f32 %v1057, %v1053
        %1061 = vrot.lane.b32.xlu0 %v1048, 24
        %v1062 = vpop.permute.xlu0 %1061
        %v1064 = vadd.f32 %v1059, %v1062
        %vm1065 = vcmask 261312
        %1066 = vst.msk [vmem:[#allocation5] sm:$0xff] %vm1065, %v1064
        %1067 = vst.msk [vmem:[#allocation3] sm:$0xff] %vm1004, %v986
        %p1068 = scmp.eq.s32.totalorder %s34, 1
        // Predicated region
        $region65: #{tpu_custom_call.1} parent=43 // pred_check
          %p1069 = pneg %p1068
        $region66: #{tpu_custom_call.1} parent=43 // pred_check_branch
          %1071 = sbr.rel (%p1069) target = $region68
        $region67: #{tpu_custom_call.1} parent=43 // pred_region
          %v1072 = vld [vmem:[#allocation5] sm:$0xff]
          %v1073 = vld [vmem:[#allocation4] sm:$0xff]
          %v1074 = vrcp.pop %v1073
          %v1075 = vmul.f32 1.0, %v1074
          %1077 = vset.pattern.permute.xlu0 0
          %1078 = vperm.xlu0 %1077, %v1075
          %v1079 = vpop.permute.xlu0 %1078
          %v1081 = vmul.f32 %v1072, %v1079
          %1082 = vst.msk [vmem:[#allocation5] sm:$0xff] %vm527, %v1081
          %v1083 = vld [vmem:[#allocation5] sm:$0xff]
          %v1084 = vld [vmem:[#allocation4] sm:$0xff]
          %v1085 = vrcp.pop %v1084
          %v1086 = vmul.f32 1.0, %v1085
          %1088 = vset.pattern.permute.xlu0 1
          %1089 = vperm.xlu0 %1088, %v1086
          %v1090 = vpop.permute.xlu0 %1089
          %v1092 = vmul.f32 %v1083, %v1090
          %1093 = vst.msk [vmem:[#allocation5] sm:$0xff] %vm793, %v1092
          %v1094 = vld [vmem:[#allocation5] sm:$0xff]
          %v1095 = vld [vmem:[#allocation4] sm:$0xff]
          %v1096 = vrcp.pop %v1095
          %v1097 = vmul.f32 1.0, %v1096
          %1099 = vset.pattern.permute.xlu0 2
          %1100 = vperm.xlu0 %1099, %v1097
          %v1101 = vpop.permute.xlu0 %1100
          %v1103 = vmul.f32 %v1094, %v1101
          %1104 = vst.msk [vmem:[#allocation5] sm:$0xff] %vm929, %v1103
          %v1105 = vld [vmem:[#allocation5] sm:$0xff]
          %v1106 = vld [vmem:[#allocation4] sm:$0xff]
          %v1107 = vrcp.pop %v1106
          %v1108 = vmul.f32 1.0, %v1107
          %1110 = vset.pattern.permute.xlu0 3
          %1111 = vperm.xlu0 %1110, %v1108
          %v1112 = vpop.permute.xlu0 %1111
          %v1114 = vmul.f32 %v1105, %v1112
          %1115 = vst.msk [vmem:[#allocation5] sm:$0xff] %vm1065, %v1114
          %v1116 = vld [vmem:[#allocation5] sm:$0xff]
          %v1117 = vpack.c.bf16 %v1116, %v1116
          %v1118 = vld [vmem:[%s5] sm:$0xf]
          %v1119 = vld [vmem:[%s5 + $0x4] sm:$0xf]
          %v1120 = vld [vmem:[%s5 + $0x8] sm:$0xf]
          %v1121 = vld [vmem:[%s5 + $0xc] sm:$0xf]
          %v1126 = vunpack.c.l.b16 %v1118
          %v1127 = vunpack.c.l.b16 %v1119
          %v1128 = vunpack.c.l.b16 %v1120
          %v1129 = vunpack.c.l.b16 %v1121
          %v1130 = vpack.c.b16 %v1127, %v1126
          %v1131 = vpack.c.b16 %v1129, %v1128
          %v1135 = vsel %vm480, %v1117, 0
          %1137 = vmatprep.subr.bf16.mxu0 0
          %1138 = vmatpush1.bf16.msra.mxu0 %v1130
          %1139 = vmatprep.subr.bf16.mxu0 0
          %1140 = vmatpush1.bf16.msra.mxu0 %v1131
          %1141 = vmatprep.subr.bf16.mxu0 0
          %1142 = vmatpush1.bf16.msra.mxu0 0
          %1143 = vmatprep.subr.bf16.mxu0 0
          %1144 = vmatpush1.bf16.msra.mxu0 0
          %1145 = vmatprep.subr.bf16.mxu0 0
          %1146 = vmatpush1.bf16.msra.mxu0 0
          %1147 = vmatprep.subr.bf16.mxu0 0
          %1148 = vmatpush1.bf16.msra.mxu0 0
          %1149 = vmatprep.subr.bf16.mxu0 0
          %1150 = vmatpush1.bf16.msra.mxu0 0
          %1151 = vmatprep.subr.bf16.mxu0 0
          %1152 = vmatpush1.bf16.msra.mxu0 0
          %1153 = vmatprep.subr.bf16.mxu0 0
          %1154 = vmatpush1.bf16.msra.mxu0 0
          %1155 = vmatprep.subr.bf16.mxu0 0
          %1156 = vmatpush1.bf16.msra.mxu0 0
          %1157 = vmatprep.subr.bf16.mxu0 0
          %1158 = vmatpush1.bf16.msra.mxu0 0
          %1159 = vmatprep.subr.bf16.mxu0 0
          %1160 = vmatpush1.bf16.msra.mxu0 0
          %1161 = vmatprep.subr.bf16.mxu0 0
          %1162 = vmatpush1.bf16.msra.mxu0 0
          %1163 = vmatprep.subr.bf16.mxu0 0
          %1164 = vmatpush1.bf16.msra.mxu0 0
          %1165 = vmatprep.subr.bf16.mxu0 0
          %1166 = vmatpush1.bf16.msra.mxu0 0
          %1167 = vmatprep.subr.bf16.mxu0 0
          %1168 = vmatpush1.bf16.msra.mxu0 0
          %1169 = vmatprep.mubr.bf16.mxu0 0
          %1170 = vmatmul.mubr.bf16.gmra.mrb[0].mxu0 %v1135
          %v1171 = vpop.f32.mrb[0].mxu0
          %v1172 = vadd.f32 0.0, %v1171
          %v1173 = vpop.f32.mrb[0].mxu0
          %v1174 = vpop.f32.mrb[0].mxu0
          %v1175 = vpop.f32.mrb[0].mxu0
          %1176 = vdwg.mxu0
          %v1177 = vld [vmem:[%s314] sm:$0xff]
          %v1178 = vadd.f32 %v1177, %v1172
          %1179 = vst.msk [vmem:[%s364] sm:$0xff] %vm480, %v1178
        $region68: #{tpu_custom_call.1} parent=43 // pred_fallthru
          _
        %s1180 = sand.u32 %s196, 1
        %s1181 = scalar_lea.sflag [#allocation8], %s1180
        %s1182 = sand.u32 %s196, 1
        %s1183 = smul.addr %s1182, 8
        %s1184 = scalar_lea.vmem [#allocation14], %s1183
        // Predicated region
        $region69: #{tpu_custom_call.1} parent=43 // pred_check
          %p1185 = pneg %p206
        $region70: #{tpu_custom_call.1} parent=43 // pred_check_branch
          %1187 = sbr.rel (%p1185) target = $region72
        $region71: #{tpu_custom_call.1} parent=43 // pred_region
          %s1189 = ssub.s32 128, 128
          %1190 = vsyncadd %s1181, %s1189
          %s1191 = smul.addr %s32, 2
          %s1192 = sadd.s32 %s33, %s1191
          %s1193 = smul.addr %s1192, 128
          %s1194 = scalar_lea.hbm %s6, %s1193
          %s1196 = sshll.u32 %s1184, 4
          %s1197 = int_to_ptr.vmem [resolvable:$true] %s1196
          %1199 = dma.vmem_to_hbm [thread:$0]  %s1197, 128, %s1194, %s1181
        $region72: #{tpu_custom_call.1} parent=43 // pred_fallthru
          _
      $region44: #{tpu_custom_call.1} parent=5 // pred_fallthru
        _
      %p1200 = scmp.le.s32.totalorder 2, %s22
      // Predicated region
      $region73: #{tpu_custom_call.1} parent=5 // pred_check
        %p1201 = pneg %p1200
      $region74: #{tpu_custom_call.1} parent=5 // pred_check_branch
        %1203 = sbr.rel (%p1201) target = $region76
      $region75: #{tpu_custom_call.1} parent=5 // pred_region
        %s1204 = ssub.s32 %s22, 2
        // Predicated region
        $region77: #{tpu_custom_call.1} parent=75 // pred_check
          %p1205 = pneg %p212
        $region78: #{tpu_custom_call.1} parent=75 // pred_check_branch
          %1207 = sbr.rel (%p1205) target = $region80
        $region79: #{tpu_custom_call.1} parent=75 // pred_region
          %s1208 = sand.u32 %s197, 1
          %s1209 = scalar_lea.sflag [#allocation8], %s1208
          %s1210 = sand.u32 %s197, 1
          %s1211 = smul.addr %s1210, 8
          %s1212 = scalar_lea.vmem [#allocation14], %s1211
          %1213 = dma.done %s1209, 128
        $region80: #{tpu_custom_call.1} parent=75 // pred_fallthru
          _
      $region76: #{tpu_custom_call.1} parent=5 // pred_fallthru
        _
    $region6: #{tpu_custom_call.1} parent=1 // loop_footer
      %s26 = sadd.s32 1, %s22
    $region7: #{tpu_custom_call.1} parent=1 // loop_footer_branch
      %21 = sbr.rel target = $region3
    $region8: #{tpu_custom_call.1} parent=1 // loop_exit
      _
    %1214 = vsyncpa [#allocation7], 1
    %s1215 = scalar_lea.sflag [#allocation7], 1
    %1216 = vsyncpa %s1215, 1
    %1217 = vsyncpa [#allocation10], 1
    %s1218 = scalar_lea.sflag [#allocation10], 1
    %1219 = vsyncpa %s1218, 1
    %1220 = vsyncpa [#allocation13], 1
    %1221 = vsyncpa [#allocation8], 1
    %s1222 = scalar_lea.sflag [#allocation8], 1
    %1223 = vsyncpa %s1222, 1

</llo_original>
